<compile_context>
chip_gen: v7x
topology: tpu7x:2x2x1
jax: 0.10.0
libtpu: 0.0.40
codegen_flags: <defaults>
</compile_context>

<pallas_src>
import math
import functools

import jax
import jax.numpy as jnp
from jax.experimental import pallas as pl
from jax.experimental.pallas import tpu as pltpu


NEG_BIG = -1.0e30  # additive causal-mask bias (kept in f32; exp() underflows to 0)

# per-layer (streamed) weights and layer-independent (constant) weights
LAYER_KEYS = ("wqkv", "bqkv", "wo", "bo",
              "g1", "be1", "w1", "bf1", "w2", "bf2", "g2", "be2")
CONST_KEYS = ("gf", "bfin", "wp", "bp")


def _layernorm(z, g, b, eps=1e-5):
    mu = jnp.mean(z, axis=-1, keepdims=True)
    var = jnp.mean((z - mu) ** 2, axis=-1, keepdims=True)
    return (z - mu) * jax.lax.rsqrt(var + eps) * g + b


# ------------------------------- fused kernel --------------------------------

def fused_layer_kernel(x_ref,
                       wqkv_ref, bqkv_ref, wo_ref, bo_ref,
                       g1_ref, be1_ref, w1_ref, bf1_ref, w2_ref, bf2_ref,
                       g2_ref, be2_ref,
                       gf_ref, bfin_ref, wp_ref, bp_ref,
                       o_ref, x_scr, *, n_heads):
    """One grid step = one (batch element, layer) pair.

    The activation is carried across the layer axis in the VMEM scratch `x_scr`;
    the final LayerNorm + predictor run only on the last layer step.
    """
    l = pl.program_id(1)
    last = pl.num_programs(1) - 1
    L, D = x_scr.shape
    H = n_heads
    E = D // H
    bf16 = jnp.bfloat16
    f32 = jnp.float32

    # Load the embedded input into the carry scratch on the first layer.
    @pl.when(l == 0)
    def _():
        x_scr[...] = x_ref[...]

    x = x_scr[...]                                            # (L, D) f32

    # Causal additive bias, kept in f32 (must NOT be cast to bf16).
    row = jax.lax.broadcasted_iota(jnp.int32, (L, L), 0)
    col = jax.lax.broadcasted_iota(jnp.int32, (L, L), 1)
    causal_bias = jnp.where(col <= row, 0.0, NEG_BIG).astype(f32)

    # ---- attention: fused QKV projection (softmax temp folded into q block) ----
    qkv = jnp.dot(x.astype(bf16), wqkv_ref[...],
                  preferred_element_type=f32) + bqkv_ref[...]  # (L, 3D)

    head_ctx = []
    for h in range(H):                                         # H is small & static
        qh = qkv[:, h * E:(h + 1) * E].astype(bf16)            # (L, E)
        kh = qkv[:, D + h * E:D + (h + 1) * E].astype(bf16)    # (L, E)
        vh = qkv[:, 2 * D + h * E:2 * D + (h + 1) * E].astype(bf16)
        s = jnp.einsum('le,se->ls', qh, kh,
                       preferred_element_type=f32)             # (L, L) f32
        s = s + causal_bias
        s = s - jnp.max(s, axis=-1, keepdims=True)
        p = jnp.exp(s)
        # approx reciprocal runs on the EUP slot; ~1e-3 rel. err. vs exact divide
        p = p * pl.reciprocal(jnp.sum(p, axis=-1, keepdims=True), approx=True)
        head_ctx.append(jnp.dot(p.astype(bf16), vh,
                                preferred_element_type=f32))   # (L, E)
    ctx = jnp.concatenate(head_ctx, axis=-1)                   # (L, H*E) = (L, D)

    # Single output projection: head reduction happens inside the MXU (K = H*E).
    attn = jnp.dot(ctx.astype(bf16), wo_ref[...],
                   preferred_element_type=f32) + bo_ref[...]

    # ---- post-norm residual structure (fast_transformers encoder layer) ----
    x = _layernorm(x + attn, g1_ref[...], be1_ref[...])
    y = jnp.dot(x.astype(bf16), w1_ref[...],
                preferred_element_type=f32) + bf1_ref[...]
    y = jnp.maximum(y, 0.0)                                    # ReLU
    y = jnp.dot(y.astype(bf16), w2_ref[...],
                preferred_element_type=f32) + bf2_ref[...]
    x = _layernorm(x + y, g2_ref[...], be2_ref[...])

    x_scr[...] = x                                             # carry to next layer

    # ---- final encoder LayerNorm + predictor (lane-dense padded output) ----
    @pl.when(l == last)
    def _():
        z = _layernorm(x, gf_ref[...], bfin_ref[...])
        o_ref[...] = jnp.dot(z.astype(bf16), wp_ref[...],
                             preferred_element_type=f32) + bp_ref[...]


# ------------------------------ pallas wrapper --------------------------------

def run_fused_model(h, stacked, *, n_layers, n_heads):
    B, L, D = h.shape
    P = stacked["wp"].shape[1]
    d_ff = stacked["w1"].shape[-1]

    streamed = [stacked[k] for k in LAYER_KEYS]
    consts = [stacked[k] for k in CONST_KEYS]

    in_specs = [pl.BlockSpec((None, L, D), lambda b, l: (b, 0, 0))]
    for w in streamed:     # one layer slice per grid step, double-buffered by Pallas
        in_specs.append(pl.BlockSpec((None,) + tuple(w.shape[1:]),
                                     lambda b, l: (l, 0, 0)))
    for w in consts:       # layer-independent; tiny (final LN + padded predictor)
        in_specs.append(pl.BlockSpec(tuple(w.shape), lambda b, l: (0, 0)))

    # Explicit scoped-VMEM budget: 2 buffers of one layer's weights + constants +
    # in/out blocks + carry scratch + attention/FFN temporaries, with headroom.
    per_layer_bytes = sum(w.size * w.dtype.itemsize // n_layers for w in streamed)
    const_bytes = sum(w.size * w.dtype.itemsize for w in consts)
    io_bytes = (L * D + L * P) * 4
    tmp_bytes = (L * 3 * D + 2 * L * L + L * d_ff + 4 * L * D) * 4
    need = 2 * per_layer_bytes + 2 * const_bytes + 2 * io_bytes + L * D * 4 + tmp_bytes
    vmem_limit = int(min(max(2 * need, 32 << 20), 64 << 20))   # cap: v7x physical VMEM

    return pl.pallas_call(
        functools.partial(fused_layer_kernel, n_heads=n_heads),
        out_shape=jax.ShapeDtypeStruct((B, L, P), jnp.float32),
        grid=(B, n_layers),
        in_specs=in_specs,
        out_specs=pl.BlockSpec((None, L, P), lambda b, l: (b, 0, 0)),
        scratch_shapes=[pltpu.VMEM((L, D), jnp.float32)],      # activation carry
        compiler_params=pltpu.CompilerParams(
            dimension_semantics=("parallel", "arbitrary"),
            vmem_limit_bytes=vmem_limit),
    )(h, *streamed, *consts)


# ------------------------------- model glue -----------------------------------

def positional_encoding(max_len, d):
    # NOTE: assumes d (= d_model // 2) is even, as in the reference module.
    pos = jnp.arange(max_len, dtype=jnp.float32)[:, None]
    div = jnp.exp(jnp.arange(0, d, 2, dtype=jnp.float32) * (-math.log(10000.0) / d))
    pe = jnp.zeros((max_len, d), dtype=jnp.float32)
    pe = pe.at[:, 0::2].set(jnp.sin(pos * div))
    pe = pe.at[:, 1::2].set(jnp.cos(pos * div))
    return pe


def init_params(key, d_model, sequence_length, mixtures, n_layers, n_heads, d_query):
    hidden = n_heads * d_query
    assert hidden == d_model, "transformer model dim must equal d_model"
    d_half = d_model // 2
    d_ff = n_heads * d_query * 4
    scale = 0.02

    def nrm(k, shape):
        return (scale * jax.random.normal(k, shape)).astype(jnp.float32)

    keys = jax.random.split(key, 2 + n_layers)
    params = {
        "embedding": nrm(keys[0], (256, d_half)),
        "pe": positional_encoding(sequence_length, d_half),
        "g_final": jnp.ones((1, d_model), jnp.float32),
        "b_final": jnp.zeros((1, d_model), jnp.float32),
        "wp": nrm(keys[1], (d_model, mixtures * 3)),
        "bp": jnp.zeros((1, mixtures * 3), jnp.float32),
        "layers": [],
    }
    for l in range(n_layers):
        lk = jax.random.split(keys[2 + l], 6)
        params["layers"].append({
            "wq": nrm(lk[0], (d_model, d_model)), "bq": jnp.zeros((1, d_model), jnp.float32),
            "wk": nrm(lk[1], (d_model, d_model)), "bk": jnp.zeros((1, d_model), jnp.float32),
            "wv": nrm(lk[2], (d_model, d_model)), "bv": jnp.zeros((1, d_model), jnp.float32),
            "wo": nrm(lk[3], (d_model, d_model)), "bo": jnp.zeros((1, d_model), jnp.float32),
            "g1": jnp.ones((1, d_model), jnp.float32), "be1": jnp.zeros((1, d_model), jnp.float32),
            "w1": nrm(lk[4], (d_model, d_ff)), "bf1": jnp.zeros((1, d_ff), jnp.float32),
            "w2": nrm(lk[5], (d_ff, d_model)), "bf2": jnp.zeros((1, d_model), jnp.float32),
            "g2": jnp.ones((1, d_model), jnp.float32), "be2": jnp.zeros((1, d_model), jnp.float32),
        })
    return params


def prepare_weights(params, n_layers, n_heads, d_model):
    """One-time weight prep (done at init, NOT per forward): stack per-layer
    weights, fuse Wq|Wk|Wv into a single (D, 3D) slab with the softmax
    temperature folded into the q block, cast matmul operands to bf16, and pad
    the predictor to a lane-dense (multiple-of-128) width."""
    H = n_heads
    E = d_model // H
    temp = 1.0 / math.sqrt(E)               # fast_transformers default softmax temp
    bf16 = jnp.bfloat16

    def stack(fn):
        return jnp.stack([fn(p) for p in params["layers"]], axis=0)

    stacked = {
        # fused QKV: columns ordered [Wq*temp | Wk | Wv]; head h occupies
        # columns h*E:(h+1)*E within each D-wide block (matches kernel slicing).
        "wqkv": stack(lambda p: jnp.concatenate(
            [p["wq"] * temp, p["wk"], p["wv"]], axis=1)).astype(bf16),
        "bqkv": stack(lambda p: jnp.concatenate(
            [p["bq"] * temp, p["bk"], p["bv"]], axis=1)),          # (n_layers, 1, 3D)
        "wo": stack(lambda p: p["wo"]).astype(bf16),
        "bo": stack(lambda p: p["bo"]),
        "g1": stack(lambda p: p["g1"]), "be1": stack(lambda p: p["be1"]),
        "w1": stack(lambda p: p["w1"]).astype(bf16), "bf1": stack(lambda p: p["bf1"]),
        "w2": stack(lambda p: p["w2"]).astype(bf16), "bf2": stack(lambda p: p["bf2"]),
        "g2": stack(lambda p: p["g2"]), "be2": stack(lambda p: p["be2"]),
        "gf": params["g_final"], "bfin": params["b_final"],
    }
    M = params["wp"].shape[1]
    P = ((M + 127) // 128) * 128             # lane-dense output width (>= 128)
    wp_pad = jnp.zeros((d_model, P), jnp.float32).at[:, :M].set(params["wp"])
    bp_pad = jnp.zeros((1, P), jnp.float32).at[:, :M].set(params["bp"])
    stacked["wp"] = wp_pad.astype(bf16)
    stacked["bp"] = bp_pad
    return stacked, M, P


@functools.partial(jax.jit, static_argnames=("n_heads", "n_layers", "mixtures"))
def image_generator_forward(x_int, embedding, pe, stacked, *, n_heads, n_layers, mixtures):
    B = x_int.shape[0]
    idx = x_int.reshape(B, -1)                        # x.view(B, -1)
    L = idx.shape[1]
    emb = jnp.take(embedding, idx, axis=0)            # Embedding lookup (JAX glue)
    d_half = emb.shape[-1]
    pe_b = jnp.broadcast_to(pe[:L][None], (B, L, d_half))
    h = jnp.concatenate([emb, pe_b], axis=-1).astype(jnp.float32)   # (B, L, d_model)
    # TODO(synk): dropout layers (p=0.1) are identity in eval mode and are omitted.
    out = run_fused_model(h, stacked, n_layers=n_layers, n_heads=n_heads)
    return out[:, :, :mixtures * 3]                   # drop lane padding


# ----------------------------------- main --------------------------------------

if __name__ == "__main__":
    # small config consistent with the module: d_model = n_heads * d_query
    B, H_img, W_img = 2, 4, 4
    n_layers, n_heads, d_query, mixtures = 2, 2, 16, 3
    d_model = n_heads * d_query                 # 32
    L = H_img * W_img                           # sequence_length = 16

    key = jax.random.PRNGKey(0)
    kparam, kx = jax.random.split(key)
    params = init_params(kparam, d_model, L, mixtures, n_layers, n_heads, d_query)

    # weight prep is hoisted out of the forward pass (done once)
    stacked, M, P = prepare_weights(params, n_layers, n_heads, d_model)

    x = jax.random.randint(kx, (B, H_img, W_img), 0, 256, dtype=jnp.int32)

    y = image_generator_forward(x, params["embedding"], params["pe"], stacked,
                                n_heads=n_heads, n_layers=n_layers, mixtures=mixtures)
    y = jax.block_until_ready(y)
    assert y.shape == (B, L, mixtures * 3), y.shape
    assert jnp.all(jnp.isfinite(y))
    print("KERNEL_OK")
</pallas_src>

<mosaic_0001>
module attributes {stable_mosaic.version = 11 : i64} {
  func.func @fused_layer_kernel(%arg0: i32, %arg1: i32, %arg2: memref<1x16x32xf32, #tpu.memory_space<vmem>>, %arg3: memref<1x32x96xbf16, #tpu.memory_space<vmem>>, %arg4: memref<1x1x96xf32, #tpu.memory_space<vmem>>, %arg5: memref<1x32x32xbf16, #tpu.memory_space<vmem>>, %arg6: memref<1x1x32xf32, #tpu.memory_space<vmem>>, %arg7: memref<1x1x32xf32, #tpu.memory_space<vmem>>, %arg8: memref<1x1x32xf32, #tpu.memory_space<vmem>>, %arg9: memref<1x32x128xbf16, #tpu.memory_space<vmem>>, %arg10: memref<1x1x128xf32, #tpu.memory_space<vmem>>, %arg11: memref<1x128x32xbf16, #tpu.memory_space<vmem>>, %arg12: memref<1x1x32xf32, #tpu.memory_space<vmem>>, %arg13: memref<1x1x32xf32, #tpu.memory_space<vmem>>, %arg14: memref<1x1x32xf32, #tpu.memory_space<vmem>>, %arg15: memref<1x32xf32, #tpu.memory_space<vmem>>, %arg16: memref<1x32xf32, #tpu.memory_space<vmem>>, %arg17: memref<32x128xbf16, #tpu.memory_space<vmem>>, %arg18: memref<1x128xf32, #tpu.memory_space<vmem>>, %arg19: memref<1x16x128xf32, #tpu.memory_space<vmem>>, %arg20: memref<16x32xf32, #tpu.memory_space<vmem>>) attributes {dimension_semantics = [#tpu.dimension_semantics<parallel>, #tpu.dimension_semantics<arbitrary>], iteration_bounds = array<i64: 2, 2>, scalar_prefetch = 0 : i64, scratch_operands = 1 : i64, tpu.core_type = #tpu.core_type<tc>, window_params = [{transform_indices = @transform_0, window_bounds = array<i64: 1, 16, 32>}, {transform_indices = @transform_1, window_bounds = array<i64: 1, 32, 96>}, {transform_indices = @transform_2, window_bounds = array<i64: 1, 1, 96>}, {transform_indices = @transform_3, window_bounds = array<i64: 1, 32, 32>}, {transform_indices = @transform_4, window_bounds = array<i64: 1, 1, 32>}, {transform_indices = @transform_5, window_bounds = array<i64: 1, 1, 32>}, {transform_indices = @transform_6, window_bounds = array<i64: 1, 1, 32>}, {transform_indices = @transform_7, window_bounds = array<i64: 1, 32, 128>}, {transform_indices = @transform_8, window_bounds = array<i64: 1, 1, 128>}, {transform_indices = @transform_9, window_bounds = array<i64: 1, 128, 32>}, {transform_indices = @transform_10, window_bounds = array<i64: 1, 1, 32>}, {transform_indices = @transform_11, window_bounds = array<i64: 1, 1, 32>}, {transform_indices = @transform_12, window_bounds = array<i64: 1, 1, 32>}, {pipeline_mode = #tpu.pipeline_mode<synchronous>, transform_indices = @transform_13, window_bounds = array<i64: 1, 32>}, {pipeline_mode = #tpu.pipeline_mode<synchronous>, transform_indices = @transform_14, window_bounds = array<i64: 1, 32>}, {pipeline_mode = #tpu.pipeline_mode<synchronous>, transform_indices = @transform_15, window_bounds = array<i64: 32, 128>}, {pipeline_mode = #tpu.pipeline_mode<synchronous>, transform_indices = @transform_16, window_bounds = array<i64: 1, 128>}, {transform_indices = @transform_17, window_bounds = array<i64: 1, 16, 128>}]} {
    %c0_i32 = arith.constant 0 : i32
    %0 = arith.cmpi eq, %arg1, %c0_i32 : i32
    %1 = arith.extui %0 : i1 to i32
    %c0_i32_0 = arith.constant 0 : i32
    %2 = arith.cmpi ne, %1, %c0_i32_0 : i32
    scf.if %2 {
      %c0_65 = arith.constant 0 : index
      %c0_66 = arith.constant 0 : index
      %c0_67 = arith.constant 0 : index
      %143 = vector.load %arg2[%c0_65, %c0_66, %c0_67] : memref<1x16x32xf32, #tpu.memory_space<vmem>>, vector<1x16x32xf32>
      %144 = vector.shape_cast %143 : vector<1x16x32xf32> to vector<16x32xf32>
      %c0_68 = arith.constant 0 : index
      %c0_69 = arith.constant 0 : index
      %145 = vector.load %arg20[%c0_68, %c0_69] : memref<16x32xf32, #tpu.memory_space<vmem>>, vector<16x32xf32>
      tpu.vector_store %arg20[%c0_68, %c0_69], %144 {strides = array<i32>} : memref<16x32xf32, #tpu.memory_space<vmem>>, vector<16x32xf32>,
    } else {
    }
    %c0 = arith.constant 0 : index
    %c0_1 = arith.constant 0 : index
    %3 = vector.load %arg20[%c0, %c0_1] : memref<16x32xf32, #tpu.memory_space<vmem>>, vector<16x32xf32>
    %4 = tpu.iota {dimensions = array<i32: 0>} : vector<16x16xi32>
    %5 = tpu.iota {dimensions = array<i32: 1>} : vector<16x16xi32>
    %6 = arith.cmpi sle, %5, %4 : vector<16x16xi32>
    %cst = arith.constant 0.000000e+00 : f32
    %cst_2 = arith.constant -1.000000e+30 : f32
    %7 = vector.broadcast %cst : f32 to vector<16x16xf32>
    %8 = vector.broadcast %cst_2 : f32 to vector<16x16xf32>
    %9 = arith.select %6, %7, %8 : vector<16x16xi1>, vector<16x16xf32>
    %10 = arith.truncf %3 : vector<16x32xf32> to vector<16x32xbf16>
    %c0_3 = arith.constant 0 : index
    %c0_4 = arith.constant 0 : index
    %c0_5 = arith.constant 0 : index
    %11 = vector.load %arg3[%c0_3, %c0_4, %c0_5] : memref<1x32x96xbf16, #tpu.memory_space<vmem>>, vector<1x32x96xbf16>
    %12 = vector.shape_cast %11 : vector<1x32x96xbf16> to vector<32x96xbf16>
    %cst_6 = arith.constant dense<0.000000e+00> : vector<16x96xf32>
    %13 = tpu.matmul %10, %12, %cst_6 {dimension_numbers = #tpu.dot_dimension_numbers<[1], [0], [0], [1], [0, 0, 1, 1], [], []>} : vector<16x32xbf16>, vector<32x96xbf16>, vector<16x96xf32> -> vector<16x96xf32>
    %c0_7 = arith.constant 0 : index
    %c0_8 = arith.constant 0 : index
    %c0_9 = arith.constant 0 : index
    %14 = vector.load %arg4[%c0_7, %c0_8, %c0_9] : memref<1x1x96xf32, #tpu.memory_space<vmem>>, vector<1x1x96xf32>
    %15 = vector.shape_cast %14 : vector<1x1x96xf32> to vector<1x96xf32>
    %16 = vector.broadcast %15 : vector<1x96xf32> to vector<16x96xf32>
    %17 = arith.addf %13, %16 : vector<16x96xf32>
    %18 = vector.extract_strided_slice %17 {offsets = [0, 0], sizes = [16, 16], strides = [1, 1]} : vector<16x96xf32> to vector<16x16xf32>
    %19 = arith.truncf %18 : vector<16x16xf32> to vector<16x16xbf16>
    %20 = vector.extract_strided_slice %17 {offsets = [0, 32], sizes = [16, 16], strides = [1, 1]} : vector<16x96xf32> to vector<16x16xf32>
    %21 = arith.truncf %20 : vector<16x16xf32> to vector<16x16xbf16>
    %22 = vector.extract_strided_slice %17 {offsets = [0, 64], sizes = [16, 16], strides = [1, 1]} : vector<16x96xf32> to vector<16x16xf32>
    %23 = arith.truncf %22 : vector<16x16xf32> to vector<16x16xbf16>
    "tpu.trace_start"() <{level = 10 : i32, message = "le,se->ls"}> : () -> ()
    %cst_10 = arith.constant dense<0.000000e+00> : vector<16x16xf32>
    %24 = tpu.matmul %19, %21, %cst_10 {dimension_numbers = #tpu.dot_dimension_numbers<[1], [1], [0], [0], [0, 0, 1, 0], [], []>} : vector<16x16xbf16>, vector<16x16xbf16>, vector<16x16xf32> -> vector<16x16xf32>
    "tpu.trace_stop"() : () -> ()
    %25 = arith.addf %24, %9 : vector<16x16xf32>
    %cst_11 = arith.constant dense<0xFF800000> : vector<16xf32>
    %26 = vector.multi_reduction <maximumf>, %25, %cst_11 [1] : vector<16x16xf32> to vector<16xf32>
    %27 = vector.shape_cast %26 : vector<16xf32> to vector<16x1xf32>
    %28 = vector.broadcast %27 : vector<16x1xf32> to vector<16x16xf32>
    %29 = arith.subf %25, %28 : vector<16x16xf32>
    %30 = math.exp %29 : vector<16x16xf32>
    %cst_12 = arith.constant dense<0.000000e+00> : vector<16xf32>
    %31 = vector.multi_reduction <add>, %30, %cst_12 [1] : vector<16x16xf32> to vector<16xf32>
    %32 = vector.shape_cast %31 : vector<16xf32> to vector<16x1xf32>
    %33 = tpu.reciprocal %32 {approx = true} : vector<16x1xf32> -> vector<16x1xf32>
    %34 = vector.broadcast %33 : vector<16x1xf32> to vector<16x16xf32>
    %35 = arith.mulf %30, %34 : vector<16x16xf32>
    %36 = arith.truncf %35 : vector<16x16xf32> to vector<16x16xbf16>
    %cst_13 = arith.constant dense<0.000000e+00> : vector<16x16xf32>
    %37 = tpu.matmul %36, %23, %cst_13 {dimension_numbers = #tpu.dot_dimension_numbers<[1], [0], [0], [1], [0, 0, 1, 1], [], []>} : vector<16x16xbf16>, vector<16x16xbf16>, vector<16x16xf32> -> vector<16x16xf32>
    %38 = vector.extract_strided_slice %17 {offsets = [0, 16], sizes = [16, 16], strides = [1, 1]} : vector<16x96xf32> to vector<16x16xf32>
    %39 = arith.truncf %38 : vector<16x16xf32> to vector<16x16xbf16>
    %40 = vector.extract_strided_slice %17 {offsets = [0, 48], sizes = [16, 16], strides = [1, 1]} : vector<16x96xf32> to vector<16x16xf32>
    %41 = arith.truncf %40 : vector<16x16xf32> to vector<16x16xbf16>
    %42 = vector.extract_strided_slice %17 {offsets = [0, 80], sizes = [16, 16], strides = [1, 1]} : vector<16x96xf32> to vector<16x16xf32>
    %43 = arith.truncf %42 : vector<16x16xf32> to vector<16x16xbf16>
    "tpu.trace_start"() <{level = 10 : i32, message = "le,se->ls"}> : () -> ()
    %cst_14 = arith.constant dense<0.000000e+00> : vector<16x16xf32>
    %44 = tpu.matmul %39, %41, %cst_14 {dimension_numbers = #tpu.dot_dimension_numbers<[1], [1], [0], [0], [0, 0, 1, 0], [], []>} : vector<16x16xbf16>, vector<16x16xbf16>, vector<16x16xf32> -> vector<16x16xf32>
    "tpu.trace_stop"() : () -> ()
    %45 = arith.addf %44, %9 : vector<16x16xf32>
    %cst_15 = arith.constant dense<0xFF800000> : vector<16xf32>
    %46 = vector.multi_reduction <maximumf>, %45, %cst_15 [1] : vector<16x16xf32> to vector<16xf32>
    %47 = vector.shape_cast %46 : vector<16xf32> to vector<16x1xf32>
    %48 = vector.broadcast %47 : vector<16x1xf32> to vector<16x16xf32>
    %49 = arith.subf %45, %48 : vector<16x16xf32>
    %50 = math.exp %49 : vector<16x16xf32>
    %cst_16 = arith.constant dense<0.000000e+00> : vector<16xf32>
    %51 = vector.multi_reduction <add>, %50, %cst_16 [1] : vector<16x16xf32> to vector<16xf32>
    %52 = vector.shape_cast %51 : vector<16xf32> to vector<16x1xf32>
    %53 = tpu.reciprocal %52 {approx = true} : vector<16x1xf32> -> vector<16x1xf32>
    %54 = vector.broadcast %53 : vector<16x1xf32> to vector<16x16xf32>
    %55 = arith.mulf %50, %54 : vector<16x16xf32>
    %56 = arith.truncf %55 : vector<16x16xf32> to vector<16x16xbf16>
    %cst_17 = arith.constant dense<0.000000e+00> : vector<16x16xf32>
    %57 = tpu.matmul %56, %43, %cst_17 {dimension_numbers = #tpu.dot_dimension_numbers<[1], [0], [0], [1], [0, 0, 1, 1], [], []>} : vector<16x16xbf16>, vector<16x16xbf16>, vector<16x16xf32> -> vector<16x16xf32>
    %58 = tpu.concatenate %37, %57 in 1 : vector<16x16xf32>, vector<16x16xf32> -> vector<16x32xf32>
    %59 = arith.truncf %58 : vector<16x32xf32> to vector<16x32xbf16>
    %c0_18 = arith.constant 0 : index
    %c0_19 = arith.constant 0 : index
    %c0_20 = arith.constant 0 : index
    %60 = vector.load %arg5[%c0_18, %c0_19, %c0_20] : memref<1x32x32xbf16, #tpu.memory_space<vmem>>, vector<1x32x32xbf16>
    %61 = vector.shape_cast %60 : vector<1x32x32xbf16> to vector<32x32xbf16>
    %cst_21 = arith.constant dense<0.000000e+00> : vector<16x32xf32>
    %62 = tpu.matmul %59, %61, %cst_21 {dimension_numbers = #tpu.dot_dimension_numbers<[1], [0], [0], [1], [0, 0, 1, 1], [], []>} : vector<16x32xbf16>, vector<32x32xbf16>, vector<16x32xf32> -> vector<16x32xf32>
    %c0_22 = arith.constant 0 : index
    %c0_23 = arith.constant 0 : index
    %c0_24 = arith.constant 0 : index
    %63 = vector.load %arg6[%c0_22, %c0_23, %c0_24] : memref<1x1x32xf32, #tpu.memory_space<vmem>>, vector<1x1x32xf32>
    %64 = vector.shape_cast %63 : vector<1x1x32xf32> to vector<1x32xf32>
    %65 = vector.broadcast %64 : vector<1x32xf32> to vector<16x32xf32>
    %66 = arith.addf %62, %65 : vector<16x32xf32>
    %67 = arith.addf %3, %66 : vector<16x32xf32>
    %c0_25 = arith.constant 0 : index
    %c0_26 = arith.constant 0 : index
    %c0_27 = arith.constant 0 : index
    %68 = vector.load %arg7[%c0_25, %c0_26, %c0_27] : memref<1x1x32xf32, #tpu.memory_space<vmem>>, vector<1x1x32xf32>
    %69 = vector.shape_cast %68 : vector<1x1x32xf32> to vector<1x32xf32>
    %c0_28 = arith.constant 0 : index
    %c0_29 = arith.constant 0 : index
    %c0_30 = arith.constant 0 : index
    %70 = vector.load %arg8[%c0_28, %c0_29, %c0_30] : memref<1x1x32xf32, #tpu.memory_space<vmem>>, vector<1x1x32xf32>
    %71 = vector.shape_cast %70 : vector<1x1x32xf32> to vector<1x32xf32>
    %cst_31 = arith.constant dense<0.000000e+00> : vector<16xf32>
    %72 = vector.multi_reduction <add>, %67, %cst_31 [1] : vector<16x32xf32> to vector<16xf32>
    %73 = vector.shape_cast %72 : vector<16xf32> to vector<16x1xf32>
    %cst_32 = arith.constant 3.200000e+01 : f32
    %74 = vector.broadcast %cst_32 : f32 to vector<16x1xf32>
    %75 = arith.divf %73, %74 : vector<16x1xf32>
    %76 = vector.broadcast %75 : vector<16x1xf32> to vector<16x32xf32>
    %77 = arith.subf %67, %76 : vector<16x32xf32>
    %78 = arith.mulf %77, %77 : vector<16x32xf32>
    %cst_33 = arith.constant dense<0.000000e+00> : vector<16xf32>
    %79 = vector.multi_reduction <add>, %78, %cst_33 [1] : vector<16x32xf32> to vector<16xf32>
    %80 = vector.shape_cast %79 : vector<16xf32> to vector<16x1xf32>
    %cst_34 = arith.constant 3.200000e+01 : f32
    %81 = vector.broadcast %cst_34 : f32 to vector<16x1xf32>
    %82 = arith.divf %80, %81 : vector<16x1xf32>
    %83 = vector.broadcast %75 : vector<16x1xf32> to vector<16x32xf32>
    %84 = arith.subf %67, %83 : vector<16x32xf32>
    %cst_35 = arith.constant 9.99999974E-6 : f32
    %85 = vector.broadcast %cst_35 : f32 to vector<16x1xf32>
    %86 = arith.addf %82, %85 : vector<16x1xf32>
    %87 = math.rsqrt %86 : vector<16x1xf32>
    %88 = vector.broadcast %87 : vector<16x1xf32> to vector<16x32xf32>
    %89 = arith.mulf %84, %88 : vector<16x32xf32>
    %90 = vector.broadcast %69 : vector<1x32xf32> to vector<16x32xf32>
    %91 = arith.mulf %89, %90 : vector<16x32xf32>
    %92 = vector.broadcast %71 : vector<1x32xf32> to vector<16x32xf32>
    %93 = arith.addf %91, %92 : vector<16x32xf32>
    %94 = arith.truncf %93 : vector<16x32xf32> to vector<16x32xbf16>
    %c0_36 = arith.constant 0 : index
    %c0_37 = arith.constant 0 : index
    %c0_38 = arith.constant 0 : index
    %95 = vector.load %arg9[%c0_36, %c0_37, %c0_38] : memref<1x32x128xbf16, #tpu.memory_space<vmem>>, vector<1x32x128xbf16>
    %96 = vector.shape_cast %95 : vector<1x32x128xbf16> to vector<32x128xbf16>
    %cst_39 = arith.constant dense<0.000000e+00> : vector<16x128xf32>
    %97 = tpu.matmul %94, %96, %cst_39 {dimension_numbers = #tpu.dot_dimension_numbers<[1], [0], [0], [1], [0, 0, 1, 1], [], []>} : vector<16x32xbf16>, vector<32x128xbf16>, vector<16x128xf32> -> vector<16x128xf32>
    %c0_40 = arith.constant 0 : index
    %c0_41 = arith.constant 0 : index
    %c0_42 = arith.constant 0 : index
    %98 = vector.load %arg10[%c0_40, %c0_41, %c0_42] : memref<1x1x128xf32, #tpu.memory_space<vmem>>, vector<1x1x128xf32>
    %99 = vector.shape_cast %98 : vector<1x1x128xf32> to vector<1x128xf32>
    %100 = vector.broadcast %99 : vector<1x128xf32> to vector<16x128xf32>
    %101 = arith.addf %97, %100 : vector<16x128xf32>
    %cst_43 = arith.constant 0.000000e+00 : f32
    %102 = vector.broadcast %cst_43 : f32 to vector<16x128xf32>
    %103 = arith.maximumf %101, %102 : vector<16x128xf32>
    %104 = arith.truncf %103 : vector<16x128xf32> to vector<16x128xbf16>
    %c0_44 = arith.constant 0 : index
    %c0_45 = arith.constant 0 : index
    %c0_46 = arith.constant 0 : index
    %105 = vector.load %arg11[%c0_44, %c0_45, %c0_46] : memref<1x128x32xbf16, #tpu.memory_space<vmem>>, vector<1x128x32xbf16>
    %106 = vector.shape_cast %105 : vector<1x128x32xbf16> to vector<128x32xbf16>
    %cst_47 = arith.constant dense<0.000000e+00> : vector<16x32xf32>
    %107 = tpu.matmul %104, %106, %cst_47 {dimension_numbers = #tpu.dot_dimension_numbers<[1], [0], [0], [1], [0, 0, 1, 1], [], []>} : vector<16x128xbf16>, vector<128x32xbf16>, vector<16x32xf32> -> vector<16x32xf32>
    %c0_48 = arith.constant 0 : index
    %c0_49 = arith.constant 0 : index
    %c0_50 = arith.constant 0 : index
    %108 = vector.load %arg12[%c0_48, %c0_49, %c0_50] : memref<1x1x32xf32, #tpu.memory_space<vmem>>, vector<1x1x32xf32>
    %109 = vector.shape_cast %108 : vector<1x1x32xf32> to vector<1x32xf32>
    %110 = vector.broadcast %109 : vector<1x32xf32> to vector<16x32xf32>
    %111 = arith.addf %107, %110 : vector<16x32xf32>
    %112 = arith.addf %93, %111 : vector<16x32xf32>
    %c0_51 = arith.constant 0 : index
    %c0_52 = arith.constant 0 : index
    %c0_53 = arith.constant 0 : index
    %113 = vector.load %arg13[%c0_51, %c0_52, %c0_53] : memref<1x1x32xf32, #tpu.memory_space<vmem>>, vector<1x1x32xf32>
    %114 = vector.shape_cast %113 : vector<1x1x32xf32> to vector<1x32xf32>
    %c0_54 = arith.constant 0 : index
    %c0_55 = arith.constant 0 : index
    %c0_56 = arith.constant 0 : index
    %115 = vector.load %arg14[%c0_54, %c0_55, %c0_56] : memref<1x1x32xf32, #tpu.memory_space<vmem>>, vector<1x1x32xf32>
    %116 = vector.shape_cast %115 : vector<1x1x32xf32> to vector<1x32xf32>
    %cst_57 = arith.constant dense<0.000000e+00> : vector<16xf32>
    %117 = vector.multi_reduction <add>, %112, %cst_57 [1] : vector<16x32xf32> to vector<16xf32>
    %118 = vector.shape_cast %117 : vector<16xf32> to vector<16x1xf32>
    %cst_58 = arith.constant 3.200000e+01 : f32
    %119 = vector.broadcast %cst_58 : f32 to vector<16x1xf32>
    %120 = arith.divf %118, %119 : vector<16x1xf32>
    %121 = vector.broadcast %120 : vector<16x1xf32> to vector<16x32xf32>
    %122 = arith.subf %112, %121 : vector<16x32xf32>
    %123 = arith.mulf %122, %122 : vector<16x32xf32>
    %cst_59 = arith.constant dense<0.000000e+00> : vector<16xf32>
    %124 = vector.multi_reduction <add>, %123, %cst_59 [1] : vector<16x32xf32> to vector<16xf32>
    %125 = vector.shape_cast %124 : vector<16xf32> to vector<16x1xf32>
    %cst_60 = arith.constant 3.200000e+01 : f32
    %126 = vector.broadcast %cst_60 : f32 to vector<16x1xf32>
    %127 = arith.divf %125, %126 : vector<16x1xf32>
    %128 = vector.broadcast %120 : vector<16x1xf32> to vector<16x32xf32>
    %129 = arith.subf %112, %128 : vector<16x32xf32>
    %cst_61 = arith.constant 9.99999974E-6 : f32
    %130 = vector.broadcast %cst_61 : f32 to vector<16x1xf32>
    %131 = arith.addf %127, %130 : vector<16x1xf32>
    %132 = math.rsqrt %131 : vector<16x1xf32>
    %133 = vector.broadcast %132 : vector<16x1xf32> to vector<16x32xf32>
    %134 = arith.mulf %129, %133 : vector<16x32xf32>
    %135 = vector.broadcast %114 : vector<1x32xf32> to vector<16x32xf32>
    %136 = arith.mulf %134, %135 : vector<16x32xf32>
    %137 = vector.broadcast %116 : vector<1x32xf32> to vector<16x32xf32>
    %138 = arith.addf %136, %137 : vector<16x32xf32>
    %c0_62 = arith.constant 0 : index
    %c0_63 = arith.constant 0 : index
    %139 = vector.load %arg20[%c0_62, %c0_63] : memref<16x32xf32, #tpu.memory_space<vmem>>, vector<16x32xf32>
    tpu.vector_store %arg20[%c0_62, %c0_63], %138 {strides = array<i32>} : memref<16x32xf32, #tpu.memory_space<vmem>>, vector<16x32xf32>,
    %c1_i32 = arith.constant 1 : i32
    %140 = arith.cmpi eq, %arg1, %c1_i32 : i32
    %141 = arith.extui %140 : i1 to i32
    %c0_i32_64 = arith.constant 0 : i32
    %142 = arith.cmpi ne, %141, %c0_i32_64 : i32
    scf.if %142 {
      %c0_65 = arith.constant 0 : index
      %c0_66 = arith.constant 0 : index
      %143 = vector.load %arg15[%c0_65, %c0_66] : memref<1x32xf32, #tpu.memory_space<vmem>>, vector<1x32xf32>
      %c0_67 = arith.constant 0 : index
      %c0_68 = arith.constant 0 : index
      %144 = vector.load %arg16[%c0_67, %c0_68] : memref<1x32xf32, #tpu.memory_space<vmem>>, vector<1x32xf32>
      %cst_69 = arith.constant dense<0.000000e+00> : vector<16xf32>
      %145 = vector.multi_reduction <add>, %138, %cst_69 [1] : vector<16x32xf32> to vector<16xf32>
      %146 = vector.shape_cast %145 : vector<16xf32> to vector<16x1xf32>
      %cst_70 = arith.constant 3.200000e+01 : f32
      %147 = vector.broadcast %cst_70 : f32 to vector<16x1xf32>
      %148 = arith.divf %146, %147 : vector<16x1xf32>
      %149 = vector.broadcast %148 : vector<16x1xf32> to vector<16x32xf32>
      %150 = arith.subf %138, %149 : vector<16x32xf32>
      %151 = arith.mulf %150, %150 : vector<16x32xf32>
      %cst_71 = arith.constant dense<0.000000e+00> : vector<16xf32>
      %152 = vector.multi_reduction <add>, %151, %cst_71 [1] : vector<16x32xf32> to vector<16xf32>
      %153 = vector.shape_cast %152 : vector<16xf32> to vector<16x1xf32>
      %cst_72 = arith.constant 3.200000e+01 : f32
      %154 = vector.broadcast %cst_72 : f32 to vector<16x1xf32>
      %155 = arith.divf %153, %154 : vector<16x1xf32>
      %156 = vector.broadcast %148 : vector<16x1xf32> to vector<16x32xf32>
      %157 = arith.subf %138, %156 : vector<16x32xf32>
      %cst_73 = arith.constant 9.99999974E-6 : f32
      %158 = vector.broadcast %cst_73 : f32 to vector<16x1xf32>
      %159 = arith.addf %155, %158 : vector<16x1xf32>
      %160 = math.rsqrt %159 : vector<16x1xf32>
      %161 = vector.broadcast %160 : vector<16x1xf32> to vector<16x32xf32>
      %162 = arith.mulf %157, %161 : vector<16x32xf32>
      %163 = vector.broadcast %143 : vector<1x32xf32> to vector<16x32xf32>
      %164 = arith.mulf %162, %163 : vector<16x32xf32>
      %165 = vector.broadcast %144 : vector<1x32xf32> to vector<16x32xf32>
      %166 = arith.addf %164, %165 : vector<16x32xf32>
      %167 = arith.truncf %166 : vector<16x32xf32> to vector<16x32xbf16>
      %c0_74 = arith.constant 0 : index
      %c0_75 = arith.constant 0 : index
      %168 = vector.load %arg17[%c0_74, %c0_75] : memref<32x128xbf16, #tpu.memory_space<vmem>>, vector<32x128xbf16>
      %cst_76 = arith.constant dense<0.000000e+00> : vector<16x128xf32>
      %169 = tpu.matmul %167, %168, %cst_76 {dimension_numbers = #tpu.dot_dimension_numbers<[1], [0], [0], [1], [0, 0, 1, 1], [], []>} : vector<16x32xbf16>, vector<32x128xbf16>, vector<16x128xf32> -> vector<16x128xf32>
      %c0_77 = arith.constant 0 : index
      %c0_78 = arith.constant 0 : index
      %170 = vector.load %arg18[%c0_77, %c0_78] : memref<1x128xf32, #tpu.memory_space<vmem>>, vector<1x128xf32>
      %171 = vector.broadcast %170 : vector<1x128xf32> to vector<16x128xf32>
      %172 = arith.addf %169, %171 : vector<16x128xf32>
      %c0_79 = arith.constant 0 : index
      %c0_80 = arith.constant 0 : index
      %c0_81 = arith.constant 0 : index
      %173 = vector.load %arg19[%c0_79, %c0_80, %c0_81] : memref<1x16x128xf32, #tpu.memory_space<vmem>>, vector<1x16x128xf32>
      %174 = vector.shape_cast %173 : vector<1x16x128xf32> to vector<16x128xf32>
      %175 = vector.shape_cast %172 : vector<16x128xf32> to vector<1x16x128xf32>
      tpu.vector_store %arg19[%c0_79, %c0_80, %c0_81], %175 {strides = array<i32>} : memref<1x16x128xf32, #tpu.memory_space<vmem>>, vector<1x16x128xf32>,
    } else {
    }
    return
  }
  func.func @transform_0(%arg0: i32, %arg1: i32) -> (i32, i32, i32) {
    %c0_i32 = arith.constant 0 : i32
    %c0_i32_0 = arith.constant 0 : i32
    %c0_i32_1 = arith.constant 0 : i32
    return %arg0, %c0_i32, %c0_i32_0 : i32, i32, i32
  }
  func.func @transform_1(%arg0: i32, %arg1: i32) -> (i32, i32, i32) {
    %c0_i32 = arith.constant 0 : i32
    %c0_i32_0 = arith.constant 0 : i32
    %c0_i32_1 = arith.constant 0 : i32
    return %arg1, %c0_i32, %c0_i32_0 : i32, i32, i32
  }
  func.func @transform_2(%arg0: i32, %arg1: i32) -> (i32, i32, i32) {
    %c0_i32 = arith.constant 0 : i32
    %c0_i32_0 = arith.constant 0 : i32
    %c0_i32_1 = arith.constant 0 : i32
    return %arg1, %c0_i32, %c0_i32_0 : i32, i32, i32
  }
  func.func @transform_3(%arg0: i32, %arg1: i32) -> (i32, i32, i32) {
    %c0_i32 = arith.constant 0 : i32
    %c0_i32_0 = arith.constant 0 : i32
    %c0_i32_1 = arith.constant 0 : i32
    return %arg1, %c0_i32, %c0_i32_0 : i32, i32, i32
  }
  func.func @transform_4(%arg0: i32, %arg1: i32) -> (i32, i32, i32) {
    %c0_i32 = arith.constant 0 : i32
    %c0_i32_0 = arith.constant 0 : i32
    %c0_i32_1 = arith.constant 0 : i32
    return %arg1, %c0_i32, %c0_i32_0 : i32, i32, i32
  }
  func.func @transform_5(%arg0: i32, %arg1: i32) -> (i32, i32, i32) {
    %c0_i32 = arith.constant 0 : i32
    %c0_i32_0 = arith.constant 0 : i32
    %c0_i32_1 = arith.constant 0 : i32
    return %arg1, %c0_i32, %c0_i32_0 : i32, i32, i32
  }
  func.func @transform_6(%arg0: i32, %arg1: i32) -> (i32, i32, i32) {
    %c0_i32 = arith.constant 0 : i32
    %c0_i32_0 = arith.constant 0 : i32
    %c0_i32_1 = arith.constant 0 : i32
    return %arg1, %c0_i32, %c0_i32_0 : i32, i32, i32
  }
  func.func @transform_7(%arg0: i32, %arg1: i32) -> (i32, i32, i32) {
    %c0_i32 = arith.constant 0 : i32
    %c0_i32_0 = arith.constant 0 : i32
    %c0_i32_1 = arith.constant 0 : i32
    return %arg1, %c0_i32, %c0_i32_0 : i32, i32, i32
  }
  func.func @transform_8(%arg0: i32, %arg1: i32) -> (i32, i32, i32) {
    %c0_i32 = arith.constant 0 : i32
    %c0_i32_0 = arith.constant 0 : i32
    %c0_i32_1 = arith.constant 0 : i32
    return %arg1, %c0_i32, %c0_i32_0 : i32, i32, i32
  }
  func.func @transform_9(%arg0: i32, %arg1: i32) -> (i32, i32, i32) {
    %c0_i32 = arith.constant 0 : i32
    %c0_i32_0 = arith.constant 0 : i32
    %c0_i32_1 = arith.constant 0 : i32
    return %arg1, %c0_i32, %c0_i32_0 : i32, i32, i32
  }
  func.func @transform_10(%arg0: i32, %arg1: i32) -> (i32, i32, i32) {
    %c0_i32 = arith.constant 0 : i32
    %c0_i32_0 = arith.constant 0 : i32
    %c0_i32_1 = arith.constant 0 : i32
    return %arg1, %c0_i32, %c0_i32_0 : i32, i32, i32
  }
  func.func @transform_11(%arg0: i32, %arg1: i32) -> (i32, i32, i32) {
    %c0_i32 = arith.constant 0 : i32
    %c0_i32_0 = arith.constant 0 : i32
    %c0_i32_1 = arith.constant 0 : i32
    return %arg1, %c0_i32, %c0_i32_0 : i32, i32, i32
  }
  func.func @transform_12(%arg0: i32, %arg1: i32) -> (i32, i32, i32) {
    %c0_i32 = arith.constant 0 : i32
    %c0_i32_0 = arith.constant 0 : i32
    %c0_i32_1 = arith.constant 0 : i32
    return %arg1, %c0_i32, %c0_i32_0 : i32, i32, i32
  }
  func.func @transform_13(%arg0: i32, %arg1: i32) -> (i32, i32) {
    %c0_i32 = arith.constant 0 : i32
    %c0_i32_0 = arith.constant 0 : i32
    %c0_i32_1 = arith.constant 0 : i32
    return %c0_i32, %c0_i32_0 : i32, i32
  }
  func.func @transform_14(%arg0: i32, %arg1: i32) -> (i32, i32) {
    %c0_i32 = arith.constant 0 : i32
    %c0_i32_0 = arith.constant 0 : i32
    %c0_i32_1 = arith.constant 0 : i32
    return %c0_i32, %c0_i32_0 : i32, i32
  }
  func.func @transform_15(%arg0: i32, %arg1: i32) -> (i32, i32) {
    %c0_i32 = arith.constant 0 : i32
    %c0_i32_0 = arith.constant 0 : i32
    %c0_i32_1 = arith.constant 0 : i32
    return %c0_i32, %c0_i32_0 : i32, i32
  }
  func.func @transform_16(%arg0: i32, %arg1: i32) -> (i32, i32) {
    %c0_i32 = arith.constant 0 : i32
    %c0_i32_0 = arith.constant 0 : i32
    %c0_i32_1 = arith.constant 0 : i32
    return %c0_i32, %c0_i32_0 : i32, i32
  }
  func.func @transform_17(%arg0: i32, %arg1: i32) -> (i32, i32, i32) {
    %c0_i32 = arith.constant 0 : i32
    %c0_i32_0 = arith.constant 0 : i32
    %c0_i32_1 = arith.constant 0 : i32
    return %arg0, %c0_i32, %c0_i32_0 : i32, i32, i32
  }
}

</mosaic_0001>

<llo_original>
// kernel: image_generator_forward.1
$region0: #{image_generator_forward.1}
  #allocation0 [shape = 'u32[]', space=smem, size = 0x4, offset = 0x4, fixed_abs, tag = 'smem constant byte address 0x4 - core index']
  #allocation1 [shape = 'u32[144,128]{1,0:T(1,128)}', space=vmem, size = 0x12000, scoped, tag = 'internal scratch']
  #allocation2 [shape = 'f32[16,32]{1,0:T(8,128)}', space=vmem, size = 0x2000, scoped, tag = 'scratch operand']
  %s0 = inlined_call_operand.vmem [shape: f32[2,16,32], index: 0, kind: input, shape index: {}]
  %s1 = inlined_call_operand.vmem [shape: bf16[2,32,96], index: 1, kind: input, shape index: {}]
  %s2 = inlined_call_operand.vmem [shape: f32[2,1,96], index: 2, kind: input, shape index: {}]
  %s3 = inlined_call_operand.vmem [shape: bf16[2,32,32], index: 3, kind: input, shape index: {}]
  %s4 = inlined_call_operand.vmem [shape: f32[2,1,32], index: 4, kind: input, shape index: {}]
  %s5 = inlined_call_operand.vmem [shape: f32[2,1,32], index: 5, kind: input, shape index: {}]
  %s6 = inlined_call_operand.vmem [shape: f32[2,1,32], index: 6, kind: input, shape index: {}]
  %s7 = inlined_call_operand.vmem [shape: bf16[2,32,128], index: 7, kind: input, shape index: {}]
  %s8 = inlined_call_operand.vmem [shape: f32[2,1,128], index: 8, kind: input, shape index: {}]
  %s9 = inlined_call_operand.vmem [shape: bf16[2,128,32], index: 9, kind: input, shape index: {}]
  %s10 = inlined_call_operand.vmem [shape: f32[2,1,32], index: 10, kind: input, shape index: {}]
  %s11 = inlined_call_operand.vmem [shape: f32[2,1,32], index: 11, kind: input, shape index: {}]
  %s12 = inlined_call_operand.vmem [shape: f32[2,1,32], index: 12, kind: input, shape index: {}]
  %s13 = inlined_call_operand.vmem [shape: f32[1,32], index: 13, kind: input, shape index: {}]
  %s14 = inlined_call_operand.vmem [shape: f32[1,32], index: 14, kind: input, shape index: {}]
  %s15 = inlined_call_operand.vmem [shape: bf16[32,128], index: 15, kind: input, shape index: {}]
  %s16 = inlined_call_operand.vmem [shape: f32[1,128], index: 16, kind: input, shape index: {}]
  %s17 = inlined_call_operand.vmem [shape: f32[2,16,128], index: 17, kind: output, shape index: {}]
  %s18 = sld [smem:[#allocation0]]
  $region109: #{image_generator_forward.1} parent=0
    _
  %s20 = ssub.s32 1, %s18
  %s21 = scalar_select 0, %s20, %s18
  loop: start=0, step=1, limit=6
  $region2: #{image_generator_forward.1} parent=0 // loop_pre_header
    _
  $region3: #{image_generator_forward.1} parent=0 // loop_header
    %s23 = sphi 0, %s27
    %p24 = scmp.ge.s32.totalorder %s23, 6
    %s30 = sphi 0, %s42
    %s31 = sphi 0, %s38
    %s32 = sphi 0, %s30
    %s33 = sphi 0, %s31
    %s34 = sphi 0, %s32
    %s35 = sphi 0, %s33
    %s45 = sphi 0, %s47
    %s48 = sphi 0, %s45
    %s49 = sphi 0, %s48
    %s65 = sphi 0, %s49
    %s71 = sphi 0, %s73
    %s74 = sphi 0, %s71
    %s75 = sphi 0, %s74
    %s91 = sphi 0, %s75
    %s97 = sphi 0, %s99
    %s100 = sphi 0, %s97
    %s101 = sphi 0, %s100
    %s117 = sphi 0, %s101
    %s123 = sphi 0, %s125
    %s126 = sphi 0, %s123
    %s127 = sphi 0, %s126
    %s143 = sphi 0, %s127
    %s149 = sphi 0, %s151
    %s152 = sphi 0, %s149
    %s153 = sphi 0, %s152
    %s169 = sphi 0, %s153
    %s175 = sphi 0, %s177
    %s178 = sphi 0, %s175
    %s179 = sphi 0, %s178
    %s195 = sphi 0, %s179
    %s201 = sphi 0, %s203
    %s204 = sphi 0, %s201
    %s205 = sphi 0, %s204
    %s221 = sphi 0, %s205
    %s227 = sphi 0, %s229
    %s230 = sphi 0, %s227
    %s231 = sphi 0, %s230
    %s247 = sphi 0, %s231
    %s253 = sphi 0, %s255
    %s256 = sphi 0, %s253
    %s257 = sphi 0, %s256
    %s273 = sphi 0, %s257
    %s279 = sphi 0, %s281
    %s282 = sphi 0, %s279
    %s283 = sphi 0, %s282
    %s299 = sphi 0, %s283
    %s305 = sphi 0, %s307
    %s308 = sphi 0, %s305
    %s309 = sphi 0, %s308
    %s325 = sphi 0, %s309
    %s331 = sphi 0, %s333
    %s334 = sphi 0, %s331
    %s335 = sphi 0, %s334
    %s351 = sphi 0, %s335
    %s357 = sphi 0, %s359
    %s360 = sphi 0, %s357
    %s361 = sphi 0, %s360
    %s377 = sphi 0, %s361
    %s381 = sphi 0, %s381
    %s383 = sphi 0, %s381
    %s384 = sphi 0, %s383
    %s398 = sphi 0, %s384
    %s402 = sphi 0, %s402
    %s404 = sphi 0, %s402
    %s405 = sphi 0, %s404
    %s419 = sphi 0, %s405
    %s423 = sphi 0, %s423
    %s425 = sphi 0, %s423
    %s426 = sphi 0, %s425
    %s440 = sphi 0, %s426
    %s444 = sphi 0, %s444
    %s446 = sphi 0, %s444
    %s447 = sphi 0, %s446
    %s461 = sphi 0, %s447
    %s467 = sphi 0, %s469
    %s470 = sphi 0, %s467
    %s471 = sphi 0, %s470
    %s487 = sphi 0, %s471
  $region4: #{image_generator_forward.1} parent=0 // loop_header_branch
    %26 = sbr.rel (%p24) target = $region8
  $region5: #{image_generator_forward.1} parent=0 // loop_body
    %s28 = ssub.s32 %s23, 1
    %s29 = ssub.s32 %s23, 2
    %s36 = sadd.s32 1, %s31
    %p37 = scmp.ge.s32.totalorder %s36, 2
    %s38 = scalar_select %p37, 0, %s36
    %s39 = sadd.s32 1, %s30
    %s40 = scalar_select %p37, %s39, %s30
    %p41 = scmp.ge.s32.totalorder %s40, 2
    %s42 = scalar_select %p41, 0, %s40
    %s43 = ssub.s32 %s30, %s42
    %p44 = scmp.eq.s32.totalorder %s43, 0
    %s46 = sadd.s32 %s45, 1
    %s47 = scalar_select %p44, %s45, %s46
    %p50 = pneg %p44
    %p51 = scmp.eq.s32.totalorder %s23, 3
    %p52 = por %p50, %p51
    %p53 = scmp.ne.s32.totalorder %s45, %s48
    %p54 = scmp.eq.s32.totalorder %s23, 0
    %p55 = por %p53, %p54
    %p56 = scmp.ne.s32.totalorder %s45, %s48
    %p57 = scmp.eq.s32.totalorder %s28, 3
    %p58 = por %p56, %p57
    %p59 = scmp.ne.s32.totalorder %s48, %s49
    %p60 = scmp.eq.s32.totalorder %s28, 0
    %p61 = por %p59, %p60
    %p62 = scmp.ne.s32.totalorder %s48, %s49
    %p63 = scmp.eq.s32.totalorder %s29, 3
    %p64 = por %p62, %p63
    %p66 = scmp.ne.s32.totalorder %s49, %s65
    %p67 = scmp.eq.s32.totalorder %s29, 0
    %p68 = por %p66, %p67
    %s69 = ssub.s32 %s31, %s38
    %p70 = scmp.eq.s32.totalorder %s69, 0
    %s72 = sadd.s32 %s71, 1
    %s73 = scalar_select %p70, %s71, %s72
    %p76 = pneg %p70
    %p77 = scmp.eq.s32.totalorder %s23, 3
    %p78 = por %p76, %p77
    %p79 = scmp.ne.s32.totalorder %s71, %s74
    %p80 = scmp.eq.s32.totalorder %s23, 0
    %p81 = por %p79, %p80
    %p82 = scmp.ne.s32.totalorder %s71, %s74
    %p83 = scmp.eq.s32.totalorder %s28, 3
    %p84 = por %p82, %p83
    %p85 = scmp.ne.s32.totalorder %s74, %s75
    %p86 = scmp.eq.s32.totalorder %s28, 0
    %p87 = por %p85, %p86
    %p88 = scmp.ne.s32.totalorder %s74, %s75
    %p89 = scmp.eq.s32.totalorder %s29, 3
    %p90 = por %p88, %p89
    %p92 = scmp.ne.s32.totalorder %s75, %s91
    %p93 = scmp.eq.s32.totalorder %s29, 0
    %p94 = por %p92, %p93
    %s95 = ssub.s32 %s31, %s38
    %p96 = scmp.eq.s32.totalorder %s95, 0
    %s98 = sadd.s32 %s97, 1
    %s99 = scalar_select %p96, %s97, %s98
    %p102 = pneg %p96
    %p103 = scmp.eq.s32.totalorder %s23, 3
    %p104 = por %p102, %p103
    %p105 = scmp.ne.s32.totalorder %s97, %s100
    %p106 = scmp.eq.s32.totalorder %s23, 0
    %p107 = por %p105, %p106
    %p108 = scmp.ne.s32.totalorder %s97, %s100
    %p109 = scmp.eq.s32.totalorder %s28, 3
    %p110 = por %p108, %p109
    %p111 = scmp.ne.s32.totalorder %s100, %s101
    %p112 = scmp.eq.s32.totalorder %s28, 0
    %p113 = por %p111, %p112
    %p114 = scmp.ne.s32.totalorder %s100, %s101
    %p115 = scmp.eq.s32.totalorder %s29, 3
    %p116 = por %p114, %p115
    %p118 = scmp.ne.s32.totalorder %s101, %s117
    %p119 = scmp.eq.s32.totalorder %s29, 0
    %p120 = por %p118, %p119
    %s121 = ssub.s32 %s31, %s38
    %p122 = scmp.eq.s32.totalorder %s121, 0
    %s124 = sadd.s32 %s123, 1
    %s125 = scalar_select %p122, %s123, %s124
    %p128 = pneg %p122
    %p129 = scmp.eq.s32.totalorder %s23, 3
    %p130 = por %p128, %p129
    %p131 = scmp.ne.s32.totalorder %s123, %s126
    %p132 = scmp.eq.s32.totalorder %s23, 0
    %p133 = por %p131, %p132
    %p134 = scmp.ne.s32.totalorder %s123, %s126
    %p135 = scmp.eq.s32.totalorder %s28, 3
    %p136 = por %p134, %p135
    %p137 = scmp.ne.s32.totalorder %s126, %s127
    %p138 = scmp.eq.s32.totalorder %s28, 0
    %p139 = por %p137, %p138
    %p140 = scmp.ne.s32.totalorder %s126, %s127
    %p141 = scmp.eq.s32.totalorder %s29, 3
    %p142 = por %p140, %p141
    %p144 = scmp.ne.s32.totalorder %s127, %s143
    %p145 = scmp.eq.s32.totalorder %s29, 0
    %p146 = por %p144, %p145
    %s147 = ssub.s32 %s31, %s38
    %p148 = scmp.eq.s32.totalorder %s147, 0
    %s150 = sadd.s32 %s149, 1
    %s151 = scalar_select %p148, %s149, %s150
    %p154 = pneg %p148
    %p155 = scmp.eq.s32.totalorder %s23, 3
    %p156 = por %p154, %p155
    %p157 = scmp.ne.s32.totalorder %s149, %s152
    %p158 = scmp.eq.s32.totalorder %s23, 0
    %p159 = por %p157, %p158
    %p160 = scmp.ne.s32.totalorder %s149, %s152
    %p161 = scmp.eq.s32.totalorder %s28, 3
    %p162 = por %p160, %p161
    %p163 = scmp.ne.s32.totalorder %s152, %s153
    %p164 = scmp.eq.s32.totalorder %s28, 0
    %p165 = por %p163, %p164
    %p166 = scmp.ne.s32.totalorder %s152, %s153
    %p167 = scmp.eq.s32.totalorder %s29, 3
    %p168 = por %p166, %p167
    %p170 = scmp.ne.s32.totalorder %s153, %s169
    %p171 = scmp.eq.s32.totalorder %s29, 0
    %p172 = por %p170, %p171
    %s173 = ssub.s32 %s31, %s38
    %p174 = scmp.eq.s32.totalorder %s173, 0
    %s176 = sadd.s32 %s175, 1
    %s177 = scalar_select %p174, %s175, %s176
    %p180 = pneg %p174
    %p181 = scmp.eq.s32.totalorder %s23, 3
    %p182 = por %p180, %p181
    %p183 = scmp.ne.s32.totalorder %s175, %s178
    %p184 = scmp.eq.s32.totalorder %s23, 0
    %p185 = por %p183, %p184
    %p186 = scmp.ne.s32.totalorder %s175, %s178
    %p187 = scmp.eq.s32.totalorder %s28, 3
    %p188 = por %p186, %p187
    %p189 = scmp.ne.s32.totalorder %s178, %s179
    %p190 = scmp.eq.s32.totalorder %s28, 0
    %p191 = por %p189, %p190
    %p192 = scmp.ne.s32.totalorder %s178, %s179
    %p193 = scmp.eq.s32.totalorder %s29, 3
    %p194 = por %p192, %p193
    %p196 = scmp.ne.s32.totalorder %s179, %s195
    %p197 = scmp.eq.s32.totalorder %s29, 0
    %p198 = por %p196, %p197
    %s199 = ssub.s32 %s31, %s38
    %p200 = scmp.eq.s32.totalorder %s199, 0
    %s202 = sadd.s32 %s201, 1
    %s203 = scalar_select %p200, %s201, %s202
    %p206 = pneg %p200
    %p207 = scmp.eq.s32.totalorder %s23, 3
    %p208 = por %p206, %p207
    %p209 = scmp.ne.s32.totalorder %s201, %s204
    %p210 = scmp.eq.s32.totalorder %s23, 0
    %p211 = por %p209, %p210
    %p212 = scmp.ne.s32.totalorder %s201, %s204
    %p213 = scmp.eq.s32.totalorder %s28, 3
    %p214 = por %p212, %p213
    %p215 = scmp.ne.s32.totalorder %s204, %s205
    %p216 = scmp.eq.s32.totalorder %s28, 0
    %p217 = por %p215, %p216
    %p218 = scmp.ne.s32.totalorder %s204, %s205
    %p219 = scmp.eq.s32.totalorder %s29, 3
    %p220 = por %p218, %p219
    %p222 = scmp.ne.s32.totalorder %s205, %s221
    %p223 = scmp.eq.s32.totalorder %s29, 0
    %p224 = por %p222, %p223
    %s225 = ssub.s32 %s31, %s38
    %p226 = scmp.eq.s32.totalorder %s225, 0
    %s228 = sadd.s32 %s227, 1
    %s229 = scalar_select %p226, %s227, %s228
    %p232 = pneg %p226
    %p233 = scmp.eq.s32.totalorder %s23, 3
    %p234 = por %p232, %p233
    %p235 = scmp.ne.s32.totalorder %s227, %s230
    %p236 = scmp.eq.s32.totalorder %s23, 0
    %p237 = por %p235, %p236
    %p238 = scmp.ne.s32.totalorder %s227, %s230
    %p239 = scmp.eq.s32.totalorder %s28, 3
    %p240 = por %p238, %p239
    %p241 = scmp.ne.s32.totalorder %s230, %s231
    %p242 = scmp.eq.s32.totalorder %s28, 0
    %p243 = por %p241, %p242
    %p244 = scmp.ne.s32.totalorder %s230, %s231
    %p245 = scmp.eq.s32.totalorder %s29, 3
    %p246 = por %p244, %p245
    %p248 = scmp.ne.s32.totalorder %s231, %s247
    %p249 = scmp.eq.s32.totalorder %s29, 0
    %p250 = por %p248, %p249
    %s251 = ssub.s32 %s31, %s38
    %p252 = scmp.eq.s32.totalorder %s251, 0
    %s254 = sadd.s32 %s253, 1
    %s255 = scalar_select %p252, %s253, %s254
    %p258 = pneg %p252
    %p259 = scmp.eq.s32.totalorder %s23, 3
    %p260 = por %p258, %p259
    %p261 = scmp.ne.s32.totalorder %s253, %s256
    %p262 = scmp.eq.s32.totalorder %s23, 0
    %p263 = por %p261, %p262
    %p264 = scmp.ne.s32.totalorder %s253, %s256
    %p265 = scmp.eq.s32.totalorder %s28, 3
    %p266 = por %p264, %p265
    %p267 = scmp.ne.s32.totalorder %s256, %s257
    %p268 = scmp.eq.s32.totalorder %s28, 0
    %p269 = por %p267, %p268
    %p270 = scmp.ne.s32.totalorder %s256, %s257
    %p271 = scmp.eq.s32.totalorder %s29, 3
    %p272 = por %p270, %p271
    %p274 = scmp.ne.s32.totalorder %s257, %s273
    %p275 = scmp.eq.s32.totalorder %s29, 0
    %p276 = por %p274, %p275
    %s277 = ssub.s32 %s31, %s38
    %p278 = scmp.eq.s32.totalorder %s277, 0
    %s280 = sadd.s32 %s279, 1
    %s281 = scalar_select %p278, %s279, %s280
    %p284 = pneg %p278
    %p285 = scmp.eq.s32.totalorder %s23, 3
    %p286 = por %p284, %p285
    %p287 = scmp.ne.s32.totalorder %s279, %s282
    %p288 = scmp.eq.s32.totalorder %s23, 0
    %p289 = por %p287, %p288
    %p290 = scmp.ne.s32.totalorder %s279, %s282
    %p291 = scmp.eq.s32.totalorder %s28, 3
    %p292 = por %p290, %p291
    %p293 = scmp.ne.s32.totalorder %s282, %s283
    %p294 = scmp.eq.s32.totalorder %s28, 0
    %p295 = por %p293, %p294
    %p296 = scmp.ne.s32.totalorder %s282, %s283
    %p297 = scmp.eq.s32.totalorder %s29, 3
    %p298 = por %p296, %p297
    %p300 = scmp.ne.s32.totalorder %s283, %s299
    %p301 = scmp.eq.s32.totalorder %s29, 0
    %p302 = por %p300, %p301
    %s303 = ssub.s32 %s31, %s38
    %p304 = scmp.eq.s32.totalorder %s303, 0
    %s306 = sadd.s32 %s305, 1
    %s307 = scalar_select %p304, %s305, %s306
    %p310 = pneg %p304
    %p311 = scmp.eq.s32.totalorder %s23, 3
    %p312 = por %p310, %p311
    %p313 = scmp.ne.s32.totalorder %s305, %s308
    %p314 = scmp.eq.s32.totalorder %s23, 0
    %p315 = por %p313, %p314
    %p316 = scmp.ne.s32.totalorder %s305, %s308
    %p317 = scmp.eq.s32.totalorder %s28, 3
    %p318 = por %p316, %p317
    %p319 = scmp.ne.s32.totalorder %s308, %s309
    %p320 = scmp.eq.s32.totalorder %s28, 0
    %p321 = por %p319, %p320
    %p322 = scmp.ne.s32.totalorder %s308, %s309
    %p323 = scmp.eq.s32.totalorder %s29, 3
    %p324 = por %p322, %p323
    %p326 = scmp.ne.s32.totalorder %s309, %s325
    %p327 = scmp.eq.s32.totalorder %s29, 0
    %p328 = por %p326, %p327
    %s329 = ssub.s32 %s31, %s38
    %p330 = scmp.eq.s32.totalorder %s329, 0
    %s332 = sadd.s32 %s331, 1
    %s333 = scalar_select %p330, %s331, %s332
    %p336 = pneg %p330
    %p337 = scmp.eq.s32.totalorder %s23, 3
    %p338 = por %p336, %p337
    %p339 = scmp.ne.s32.totalorder %s331, %s334
    %p340 = scmp.eq.s32.totalorder %s23, 0
    %p341 = por %p339, %p340
    %p342 = scmp.ne.s32.totalorder %s331, %s334
    %p343 = scmp.eq.s32.totalorder %s28, 3
    %p344 = por %p342, %p343
    %p345 = scmp.ne.s32.totalorder %s334, %s335
    %p346 = scmp.eq.s32.totalorder %s28, 0
    %p347 = por %p345, %p346
    %p348 = scmp.ne.s32.totalorder %s334, %s335
    %p349 = scmp.eq.s32.totalorder %s29, 3
    %p350 = por %p348, %p349
    %p352 = scmp.ne.s32.totalorder %s335, %s351
    %p353 = scmp.eq.s32.totalorder %s29, 0
    %p354 = por %p352, %p353
    %s355 = ssub.s32 %s31, %s38
    %p356 = scmp.eq.s32.totalorder %s355, 0
    %s358 = sadd.s32 %s357, 1
    %s359 = scalar_select %p356, %s357, %s358
    %p362 = pneg %p356
    %p363 = scmp.eq.s32.totalorder %s23, 3
    %p364 = por %p362, %p363
    %p365 = scmp.ne.s32.totalorder %s357, %s360
    %p366 = scmp.eq.s32.totalorder %s23, 0
    %p367 = por %p365, %p366
    %p368 = scmp.ne.s32.totalorder %s357, %s360
    %p369 = scmp.eq.s32.totalorder %s28, 3
    %p370 = por %p368, %p369
    %p371 = scmp.ne.s32.totalorder %s360, %s361
    %p372 = scmp.eq.s32.totalorder %s28, 0
    %p373 = por %p371, %p372
    %p374 = scmp.ne.s32.totalorder %s360, %s361
    %p375 = scmp.eq.s32.totalorder %s29, 3
    %p376 = por %p374, %p375
    %p378 = scmp.ne.s32.totalorder %s361, %s377
    %p379 = scmp.eq.s32.totalorder %s29, 0
    %p380 = por %p378, %p379
    %s382 = sadd.s32 %s381, 1
    %p385 = scmp.eq.s32.totalorder %s23, 3
    %p386 = scmp.ne.s32.totalorder %s381, %s383
    %p387 = scmp.eq.s32.totalorder %s23, 0
    %p388 = por %p386, %p387
    %p389 = scmp.ne.s32.totalorder %s381, %s383
    %p390 = scmp.eq.s32.totalorder %s28, 3
    %p391 = por %p389, %p390
    %p392 = scmp.ne.s32.totalorder %s383, %s384
    %p393 = scmp.eq.s32.totalorder %s28, 0
    %p394 = por %p392, %p393
    %p395 = scmp.ne.s32.totalorder %s383, %s384
    %p396 = scmp.eq.s32.totalorder %s29, 3
    %p397 = por %p395, %p396
    %p399 = scmp.ne.s32.totalorder %s384, %s398
    %p400 = scmp.eq.s32.totalorder %s29, 0
    %p401 = por %p399, %p400
    %s403 = sadd.s32 %s402, 1
    %p406 = scmp.eq.s32.totalorder %s23, 3
    %p407 = scmp.ne.s32.totalorder %s402, %s404
    %p408 = scmp.eq.s32.totalorder %s23, 0
    %p409 = por %p407, %p408
    %p410 = scmp.ne.s32.totalorder %s402, %s404
    %p411 = scmp.eq.s32.totalorder %s28, 3
    %p412 = por %p410, %p411
    %p413 = scmp.ne.s32.totalorder %s404, %s405
    %p414 = scmp.eq.s32.totalorder %s28, 0
    %p415 = por %p413, %p414
    %p416 = scmp.ne.s32.totalorder %s404, %s405
    %p417 = scmp.eq.s32.totalorder %s29, 3
    %p418 = por %p416, %p417
    %p420 = scmp.ne.s32.totalorder %s405, %s419
    %p421 = scmp.eq.s32.totalorder %s29, 0
    %p422 = por %p420, %p421
    %s424 = sadd.s32 %s423, 1
    %p427 = scmp.eq.s32.totalorder %s23, 3
    %p428 = scmp.ne.s32.totalorder %s423, %s425
    %p429 = scmp.eq.s32.totalorder %s23, 0
    %p430 = por %p428, %p429
    %p431 = scmp.ne.s32.totalorder %s423, %s425
    %p432 = scmp.eq.s32.totalorder %s28, 3
    %p433 = por %p431, %p432
    %p434 = scmp.ne.s32.totalorder %s425, %s426
    %p435 = scmp.eq.s32.totalorder %s28, 0
    %p436 = por %p434, %p435
    %p437 = scmp.ne.s32.totalorder %s425, %s426
    %p438 = scmp.eq.s32.totalorder %s29, 3
    %p439 = por %p437, %p438
    %p441 = scmp.ne.s32.totalorder %s426, %s440
    %p442 = scmp.eq.s32.totalorder %s29, 0
    %p443 = por %p441, %p442
    %s445 = sadd.s32 %s444, 1
    %p448 = scmp.eq.s32.totalorder %s23, 3
    %p449 = scmp.ne.s32.totalorder %s444, %s446
    %p450 = scmp.eq.s32.totalorder %s23, 0
    %p451 = por %p449, %p450
    %p452 = scmp.ne.s32.totalorder %s444, %s446
    %p453 = scmp.eq.s32.totalorder %s28, 3
    %p454 = por %p452, %p453
    %p455 = scmp.ne.s32.totalorder %s446, %s447
    %p456 = scmp.eq.s32.totalorder %s28, 0
    %p457 = por %p455, %p456
    %p458 = scmp.ne.s32.totalorder %s446, %s447
    %p459 = scmp.eq.s32.totalorder %s29, 3
    %p460 = por %p458, %p459
    %p462 = scmp.ne.s32.totalorder %s447, %s461
    %p463 = scmp.eq.s32.totalorder %s29, 0
    %p464 = por %p462, %p463
    %s465 = ssub.s32 %s30, %s42
    %p466 = scmp.eq.s32.totalorder %s465, 0
    %s468 = sadd.s32 %s467, 1
    %s469 = scalar_select %p466, %s467, %s468
    %p472 = pneg %p466
    %p473 = scmp.eq.s32.totalorder %s23, 3
    %p474 = por %p472, %p473
    %p475 = scmp.ne.s32.totalorder %s467, %s470
    %p476 = scmp.eq.s32.totalorder %s23, 0
    %p477 = por %p475, %p476
    %p478 = scmp.ne.s32.totalorder %s467, %s470
    %p479 = scmp.eq.s32.totalorder %s28, 3
    %p480 = por %p478, %p479
    %p481 = scmp.ne.s32.totalorder %s470, %s471
    %p482 = scmp.eq.s32.totalorder %s28, 0
    %p483 = por %p481, %p482
    %p484 = scmp.ne.s32.totalorder %s470, %s471
    %p485 = scmp.eq.s32.totalorder %s29, 3
    %p486 = por %p484, %p485
    %p488 = scmp.ne.s32.totalorder %s471, %s487
    %p489 = scmp.eq.s32.totalorder %s29, 0
    %p490 = por %p488, %p489
    %p491 = scmp.le.s32.totalorder 1, %s23
    %p492 = scmp.lt.s32.totalorder %s23, 5
    %p493 = pnand %p491, %p492
    %p494 = pneg %p493
    // Predicated region
    $region9: #{image_generator_forward.1} parent=5 // pred_check
      _
    $region10: #{image_generator_forward.1} parent=5 // pred_check_branch
      %496 = sbr.rel (%p493) target = $region12
    $region11: #{image_generator_forward.1} parent=5 // pred_region
      %s497 = ssub.s32 %s23, 1
      // Predicated region
      $region13: #{image_generator_forward.1} parent=11 // pred_check
        %p498 = pneg %p394
      $region14: #{image_generator_forward.1} parent=11 // pred_check_branch
        %500 = sbr.rel (%p498) target = $region16
      $region15: #{image_generator_forward.1} parent=11 // pred_region
        _
      $region16: #{image_generator_forward.1} parent=11 // pred_fallthru
        _
      // Predicated region
      $region17: #{image_generator_forward.1} parent=11 // pred_check
        %p501 = pneg %p415
      $region18: #{image_generator_forward.1} parent=11 // pred_check_branch
        %503 = sbr.rel (%p501) target = $region20
      $region19: #{image_generator_forward.1} parent=11 // pred_region
        _
      $region20: #{image_generator_forward.1} parent=11 // pred_fallthru
        _
      // Predicated region
      $region21: #{image_generator_forward.1} parent=11 // pred_check
        %p504 = pneg %p436
      $region22: #{image_generator_forward.1} parent=11 // pred_check_branch
        %506 = sbr.rel (%p504) target = $region24
      $region23: #{image_generator_forward.1} parent=11 // pred_region
        _
      $region24: #{image_generator_forward.1} parent=11 // pred_fallthru
        _
      // Predicated region
      $region25: #{image_generator_forward.1} parent=11 // pred_check
        %p507 = pneg %p457
      $region26: #{image_generator_forward.1} parent=11 // pred_check_branch
        %509 = sbr.rel (%p507) target = $region28
      $region27: #{image_generator_forward.1} parent=11 // pred_region
        _
      $region28: #{image_generator_forward.1} parent=11 // pred_fallthru
        _
    $region12: #{image_generator_forward.1} parent=5 // pred_fallthru
      _
    %p510 = scmp.lt.s32.totalorder %s23, 4
    // Predicated region
    $region29: #{image_generator_forward.1} parent=5 // pred_check
      %p511 = pneg %p510
    $region30: #{image_generator_forward.1} parent=5 // pred_check_branch
      %513 = sbr.rel (%p511) target = $region32
    $region31: #{image_generator_forward.1} parent=5 // pred_region
      // Predicated region
      $region33: #{image_generator_forward.1} parent=31 // pred_check
        %p514 = pneg %p55
      $region34: #{image_generator_forward.1} parent=31 // pred_check_branch
        %516 = sbr.rel (%p514) target = $region36
      $region35: #{image_generator_forward.1} parent=31 // pred_region
        %p517 = scmp.lt.s32.totalorder %s30, 1
        %s518 = scalar_select %p517, %s30, 1
        %s519 = smul.addr %s518, 2
        %s520 = smul.addr %s519, 8
        %s521 = scalar_lea.vmem %s0, %s520
      $region36: #{image_generator_forward.1} parent=31 // pred_fallthru
        _
      // Predicated region
      $region37: #{image_generator_forward.1} parent=31 // pred_check
        %p522 = pneg %p81
      $region38: #{image_generator_forward.1} parent=31 // pred_check_branch
        %524 = sbr.rel (%p522) target = $region40
      $region39: #{image_generator_forward.1} parent=31 // pred_region
        %p525 = scmp.lt.s32.totalorder %s31, 1
        %s526 = scalar_select %p525, %s31, 1
        %s527 = smul.addr %s526, 4
        %s528 = smul.addr %s527, 4
        %s529 = scalar_lea.vmem %s1, %s528
      $region40: #{image_generator_forward.1} parent=31 // pred_fallthru
        _
      // Predicated region
      $region41: #{image_generator_forward.1} parent=31 // pred_check
        %p530 = pneg %p107
      $region42: #{image_generator_forward.1} parent=31 // pred_check_branch
        %532 = sbr.rel (%p530) target = $region44
      $region43: #{image_generator_forward.1} parent=31 // pred_region
        %p533 = scmp.lt.s32.totalorder %s31, 1
        %s534 = scalar_select %p533, %s31, 1
        %s535 = scalar_lea.vmem %s2, %s534
      $region44: #{image_generator_forward.1} parent=31 // pred_fallthru
        _
      // Predicated region
      $region45: #{image_generator_forward.1} parent=31 // pred_check
        %p536 = pneg %p133
      $region46: #{image_generator_forward.1} parent=31 // pred_check_branch
        %538 = sbr.rel (%p536) target = $region48
      $region47: #{image_generator_forward.1} parent=31 // pred_region
        %p539 = scmp.lt.s32.totalorder %s31, 1
        %s540 = scalar_select %p539, %s31, 1
        %s541 = smul.addr %s540, 4
        %s542 = smul.addr %s541, 4
        %s543 = scalar_lea.vmem %s3, %s542
      $region48: #{image_generator_forward.1} parent=31 // pred_fallthru
        _
      // Predicated region
      $region49: #{image_generator_forward.1} parent=31 // pred_check
        %p544 = pneg %p159
      $region50: #{image_generator_forward.1} parent=31 // pred_check_branch
        %546 = sbr.rel (%p544) target = $region52
      $region51: #{image_generator_forward.1} parent=31 // pred_region
        %p547 = scmp.lt.s32.totalorder %s31, 1
        %s548 = scalar_select %p547, %s31, 1
        %s549 = scalar_lea.vmem %s4, %s548
      $region52: #{image_generator_forward.1} parent=31 // pred_fallthru
        _
      // Predicated region
      $region53: #{image_generator_forward.1} parent=31 // pred_check
        %p550 = pneg %p185
      $region54: #{image_generator_forward.1} parent=31 // pred_check_branch
        %552 = sbr.rel (%p550) target = $region56
      $region55: #{image_generator_forward.1} parent=31 // pred_region
        %p553 = scmp.lt.s32.totalorder %s31, 1
        %s554 = scalar_select %p553, %s31, 1
        %s555 = scalar_lea.vmem %s5, %s554
      $region56: #{image_generator_forward.1} parent=31 // pred_fallthru
        _
      // Predicated region
      $region57: #{image_generator_forward.1} parent=31 // pred_check
        %p556 = pneg %p211
      $region58: #{image_generator_forward.1} parent=31 // pred_check_branch
        %558 = sbr.rel (%p556) target = $region60
      $region59: #{image_generator_forward.1} parent=31 // pred_region
        %p559 = scmp.lt.s32.totalorder %s31, 1
        %s560 = scalar_select %p559, %s31, 1
        %s561 = scalar_lea.vmem %s6, %s560
      $region60: #{image_generator_forward.1} parent=31 // pred_fallthru
        _
      // Predicated region
      $region61: #{image_generator_forward.1} parent=31 // pred_check
        %p562 = pneg %p237
      $region62: #{image_generator_forward.1} parent=31 // pred_check_branch
        %564 = sbr.rel (%p562) target = $region64
      $region63: #{image_generator_forward.1} parent=31 // pred_region
        %p565 = scmp.lt.s32.totalorder %s31, 1
        %s566 = scalar_select %p565, %s31, 1
        %s567 = smul.addr %s566, 4
        %s568 = smul.addr %s567, 4
        %s569 = scalar_lea.vmem %s7, %s568
      $region64: #{image_generator_forward.1} parent=31 // pred_fallthru
        _
      // Predicated region
      $region65: #{image_generator_forward.1} parent=31 // pred_check
        %p570 = pneg %p263
      $region66: #{image_generator_forward.1} parent=31 // pred_check_branch
        %572 = sbr.rel (%p570) target = $region68
      $region67: #{image_generator_forward.1} parent=31 // pred_region
        %p573 = scmp.lt.s32.totalorder %s31, 1
        %s574 = scalar_select %p573, %s31, 1
        %s575 = scalar_lea.vmem %s8, %s574
      $region68: #{image_generator_forward.1} parent=31 // pred_fallthru
        _
      // Predicated region
      $region69: #{image_generator_forward.1} parent=31 // pred_check
        %p576 = pneg %p289
      $region70: #{image_generator_forward.1} parent=31 // pred_check_branch
        %578 = sbr.rel (%p576) target = $region72
      $region71: #{image_generator_forward.1} parent=31 // pred_region
        %p579 = scmp.lt.s32.totalorder %s31, 1
        %s580 = scalar_select %p579, %s31, 1
        %s581 = smul.addr %s580, 16
        %s582 = smul.addr %s581, 4
        %s583 = scalar_lea.vmem %s9, %s582
      $region72: #{image_generator_forward.1} parent=31 // pred_fallthru
        _
      // Predicated region
      $region73: #{image_generator_forward.1} parent=31 // pred_check
        %p584 = pneg %p315
      $region74: #{image_generator_forward.1} parent=31 // pred_check_branch
        %586 = sbr.rel (%p584) target = $region76
      $region75: #{image_generator_forward.1} parent=31 // pred_region
        %p587 = scmp.lt.s32.totalorder %s31, 1
        %s588 = scalar_select %p587, %s31, 1
        %s589 = scalar_lea.vmem %s10, %s588
      $region76: #{image_generator_forward.1} parent=31 // pred_fallthru
        _
      // Predicated region
      $region77: #{image_generator_forward.1} parent=31 // pred_check
        %p590 = pneg %p341
      $region78: #{image_generator_forward.1} parent=31 // pred_check_branch
        %592 = sbr.rel (%p590) target = $region80
      $region79: #{image_generator_forward.1} parent=31 // pred_region
        %p593 = scmp.lt.s32.totalorder %s31, 1
        %s594 = scalar_select %p593, %s31, 1
        %s595 = scalar_lea.vmem %s11, %s594
      $region80: #{image_generator_forward.1} parent=31 // pred_fallthru
        _
      // Predicated region
      $region81: #{image_generator_forward.1} parent=31 // pred_check
        %p596 = pneg %p367
      $region82: #{image_generator_forward.1} parent=31 // pred_check_branch
        %598 = sbr.rel (%p596) target = $region84
      $region83: #{image_generator_forward.1} parent=31 // pred_region
        %p599 = scmp.lt.s32.totalorder %s31, 1
        %s600 = scalar_select %p599, %s31, 1
        %s601 = scalar_lea.vmem %s12, %s600
      $region84: #{image_generator_forward.1} parent=31 // pred_fallthru
        _
    $region32: #{image_generator_forward.1} parent=5 // pred_fallthru
      _
    %p602 = scmp.le.s32.totalorder 1, %s23
    %p603 = scmp.lt.s32.totalorder %s23, 5
    %p604 = pnand %p602, %p603
    %p605 = pneg %p604
    // Predicated region
    $region85: #{image_generator_forward.1} parent=5 // pred_check
      _
    $region86: #{image_generator_forward.1} parent=5 // pred_check_branch
      %607 = sbr.rel (%p604) target = $region88
    $region87: #{image_generator_forward.1} parent=5 // pred_region
      %s608 = ssub.s32 %s23, 1
      %p609 = scmp.lt.s32.totalorder %s32, 1
      %s610 = scalar_select %p609, %s32, 1
      %s611 = smul.addr %s610, 2
      %s612 = smul.addr %s611, 8
      %s613 = scalar_lea.vmem %s0, %s612
      %p614 = pneg %p61
      %p615 = pneg %p58
      %p616 = scmp.lt.s32.totalorder %s33, 1
      %s617 = scalar_select %p616, %s33, 1
      %s618 = smul.addr %s617, 4
      %s619 = smul.addr %s618, 4
      %s620 = scalar_lea.vmem %s1, %s619
      %p621 = pneg %p87
      %p622 = pneg %p84
      %p623 = scmp.lt.s32.totalorder %s33, 1
      %s624 = scalar_select %p623, %s33, 1
      %s625 = scalar_lea.vmem %s2, %s624
      %p626 = pneg %p113
      %p627 = pneg %p110
      %p628 = scmp.lt.s32.totalorder %s33, 1
      %s629 = scalar_select %p628, %s33, 1
      %s630 = smul.addr %s629, 4
      %s631 = smul.addr %s630, 4
      %s632 = scalar_lea.vmem %s3, %s631
      %p633 = pneg %p139
      %p634 = pneg %p136
      %p635 = scmp.lt.s32.totalorder %s33, 1
      %s636 = scalar_select %p635, %s33, 1
      %s637 = scalar_lea.vmem %s4, %s636
      %p638 = pneg %p165
      %p639 = pneg %p162
      %p640 = scmp.lt.s32.totalorder %s33, 1
      %s641 = scalar_select %p640, %s33, 1
      %s642 = scalar_lea.vmem %s5, %s641
      %p643 = pneg %p191
      %p644 = pneg %p188
      %p645 = scmp.lt.s32.totalorder %s33, 1
      %s646 = scalar_select %p645, %s33, 1
      %s647 = scalar_lea.vmem %s6, %s646
      %p648 = pneg %p217
      %p649 = pneg %p214
      %p650 = scmp.lt.s32.totalorder %s33, 1
      %s651 = scalar_select %p650, %s33, 1
      %s652 = smul.addr %s651, 4
      %s653 = smul.addr %s652, 4
      %s654 = scalar_lea.vmem %s7, %s653
      %p655 = pneg %p243
      %p656 = pneg %p240
      %p657 = scmp.lt.s32.totalorder %s33, 1
      %s658 = scalar_select %p657, %s33, 1
      %s659 = scalar_lea.vmem %s8, %s658
      %p660 = pneg %p269
      %p661 = pneg %p266
      %p662 = scmp.lt.s32.totalorder %s33, 1
      %s663 = scalar_select %p662, %s33, 1
      %s664 = smul.addr %s663, 16
      %s665 = smul.addr %s664, 4
      %s666 = scalar_lea.vmem %s9, %s665
      %p667 = pneg %p295
      %p668 = pneg %p292
      %p669 = scmp.lt.s32.totalorder %s33, 1
      %s670 = scalar_select %p669, %s33, 1
      %s671 = scalar_lea.vmem %s10, %s670
      %p672 = pneg %p321
      %p673 = pneg %p318
      %p674 = scmp.lt.s32.totalorder %s33, 1
      %s675 = scalar_select %p674, %s33, 1
      %s676 = scalar_lea.vmem %s11, %s675
      %p677 = pneg %p347
      %p678 = pneg %p344
      %p679 = scmp.lt.s32.totalorder %s33, 1
      %s680 = scalar_select %p679, %s33, 1
      %s681 = scalar_lea.vmem %s12, %s680
      %p682 = pneg %p373
      %p683 = pneg %p370
      %p684 = pneg %p394
      %p685 = pneg %p391
      %p686 = pneg %p415
      %p687 = pneg %p412
      %p688 = pneg %p436
      %p689 = pneg %p433
      %p690 = pneg %p457
      %p691 = pneg %p454
      %p692 = pneg %p483
      %p693 = pneg %p480
      %p694 = scmp.lt.s32.totalorder %s32, 1
      %s695 = scalar_select %p694, %s32, 1
      %s696 = smul.addr %s695, 2
      %s697 = smul.addr %s696, 8
      %s698 = scalar_lea.vmem %s17, %s697
      %p699 = scmp.lt.s32.totalorder %s32, 1
      %s700 = scalar_select %p699, %s32, 1
      %s701 = smul.addr %s700, 2
      %s702 = smul.addr %s701, 8
      %s703 = scalar_lea.vmem %s0, %s702
      %p704 = scmp.lt.s32.totalorder %s33, 1
      %s705 = scalar_select %p704, %s33, 1
      %s706 = smul.addr %s705, 4
      %s707 = smul.addr %s706, 4
      %s708 = scalar_lea.vmem %s1, %s707
      %p709 = scmp.lt.s32.totalorder %s33, 1
      %s710 = scalar_select %p709, %s33, 1
      %s711 = scalar_lea.vmem %s2, %s710
      %p712 = scmp.lt.s32.totalorder %s33, 1
      %s713 = scalar_select %p712, %s33, 1
      %s714 = smul.addr %s713, 4
      %s715 = smul.addr %s714, 4
      %s716 = scalar_lea.vmem %s3, %s715
      %p717 = scmp.lt.s32.totalorder %s33, 1
      %s718 = scalar_select %p717, %s33, 1
      %s719 = scalar_lea.vmem %s4, %s718
      %p720 = scmp.lt.s32.totalorder %s33, 1
      %s721 = scalar_select %p720, %s33, 1
      %s722 = scalar_lea.vmem %s5, %s721
      %p723 = scmp.lt.s32.totalorder %s33, 1
      %s724 = scalar_select %p723, %s33, 1
      %s725 = scalar_lea.vmem %s6, %s724
      %p726 = scmp.lt.s32.totalorder %s33, 1
      %s727 = scalar_select %p726, %s33, 1
      %s728 = smul.addr %s727, 4
      %s729 = smul.addr %s728, 4
      %s730 = scalar_lea.vmem %s7, %s729
      %p731 = scmp.lt.s32.totalorder %s33, 1
      %s732 = scalar_select %p731, %s33, 1
      %s733 = scalar_lea.vmem %s8, %s732
      %p734 = scmp.lt.s32.totalorder %s33, 1
      %s735 = scalar_select %p734, %s33, 1
      %s736 = smul.addr %s735, 16
      %s737 = smul.addr %s736, 4
      %s738 = scalar_lea.vmem %s9, %s737
      %p739 = scmp.lt.s32.totalorder %s33, 1
      %s740 = scalar_select %p739, %s33, 1
      %s741 = scalar_lea.vmem %s10, %s740
      %p742 = scmp.lt.s32.totalorder %s33, 1
      %s743 = scalar_select %p742, %s33, 1
      %s744 = scalar_lea.vmem %s11, %s743
      %p745 = scmp.lt.s32.totalorder %s33, 1
      %s746 = scalar_select %p745, %s33, 1
      %s747 = scalar_lea.vmem %s12, %s746
      %p748 = scmp.lt.s32.totalorder %s32, 1
      %s749 = scalar_select %p748, %s32, 1
      %s750 = smul.addr %s749, 2
      %s751 = smul.addr %s750, 8
      %s752 = scalar_lea.vmem %s17, %s751
      %p754 = scmp.eq.s32.totalorder %s33, 0
      // Predicated region
      $region89: #{image_generator_forward.1} parent=87 // pred_check
        %p755 = pneg %p754
      $region90: #{image_generator_forward.1} parent=87 // pred_check_branch
        %757 = sbr.rel (%p755) target = $region92
      $region91: #{image_generator_forward.1} parent=87 // pred_region
        %v758 = vld [vmem:[%s703] sm:$0xff]
        %v759 = vld [vmem:[%s703 + $0x8] sm:$0xff]
        %vm760 = vcmask 261120
        %761 = vst.msk [vmem:[#allocation2] sm:$0xff] %vm760, %v758
        %762 = vst.msk [vmem:[#allocation2 + $0x8] sm:$0xff] %vm760, %v759
      $region92: #{image_generator_forward.1} parent=87 // pred_fallthru
        _
      %v763 = vld [vmem:[#allocation2] sm:$0xff]
      %v764 = vld [vmem:[#allocation2 + $0x8] sm:$0xff]
      %v765 = vlaneseq
      %v766 = vshrl.u32 %v765, 7
      %v767 = vadd.s32 %v766, 8
      %v768 = vlaneseq
      %v769 = vand.u32 %v768, 127
      %vm770 = vcmp.le.s32.totalorder %v769, %v766
      %vm771 = vcmp.le.s32.totalorder %v769, %v767
      %v772 = vsel %vm770, 0.0, -1e+30
      %v773 = vsel %vm771, 0.0, -1e+30
      %v774 = vpack.c.bf16 %v764, %v763
      %v775 = vld [vmem:[%s708] sm:$0xf]
      %v776 = vld [vmem:[%s708 + $0x4] sm:$0xf]
      %v777 = vld [vmem:[%s708 + $0x8] sm:$0xf]
      %v778 = vld [vmem:[%s708 + $0xc] sm:$0xf]
      %v779 = vld [vmem:[%s711] sm:$0x1]
      %v781 = vlaneseq
      %v782 = vshrl.u32 %v781, 7
      %v783 = vsub.s32 0, %v782
      %v784 = vrot.slane %v779, %v783
      %v790 = vunpack.c.l.b16 %v775
      %v791 = vunpack.c.l.b16 %v776
      %v792 = vunpack.c.l.b16 %v777
      %v793 = vunpack.c.l.b16 %v778
      %v794 = vpack.c.b16 %v791, %v790
      %v795 = vpack.c.b16 %v793, %v792
      %vm798 = vcmask 261120
      %v800 = vsel %vm798, %v774, 0
      %802 = vmatprep.subr.bf16.mxu0 0
      %803 = vmatpush1.bf16.msra.mxu0 %v794
      %804 = vmatprep.subr.bf16.mxu0 0
      %805 = vmatpush1.bf16.msra.mxu0 %v795
      %806 = vmatprep.subr.bf16.mxu0 0
      %807 = vmatpush1.bf16.msra.mxu0 0
      %808 = vmatprep.subr.bf16.mxu0 0
      %809 = vmatpush1.bf16.msra.mxu0 0
      %810 = vmatprep.subr.bf16.mxu0 0
      %811 = vmatpush1.bf16.msra.mxu0 0
      %812 = vmatprep.subr.bf16.mxu0 0
      %813 = vmatpush1.bf16.msra.mxu0 0
      %814 = vmatprep.subr.bf16.mxu0 0
      %815 = vmatpush1.bf16.msra.mxu0 0
      %816 = vmatprep.subr.bf16.mxu0 0
      %817 = vmatpush1.bf16.msra.mxu0 0
      %818 = vmatprep.subr.bf16.mxu0 0
      %819 = vmatpush1.bf16.msra.mxu0 0
      %820 = vmatprep.subr.bf16.mxu0 0
      %821 = vmatpush1.bf16.msra.mxu0 0
      %822 = vmatprep.subr.bf16.mxu0 0
      %823 = vmatpush1.bf16.msra.mxu0 0
      %824 = vmatprep.subr.bf16.mxu0 0
      %825 = vmatpush1.bf16.msra.mxu0 0
      %826 = vmatprep.subr.bf16.mxu0 0
      %827 = vmatpush1.bf16.msra.mxu0 0
      %828 = vmatprep.subr.bf16.mxu0 0
      %829 = vmatpush1.bf16.msra.mxu0 0
      %830 = vmatprep.subr.bf16.mxu0 0
      %831 = vmatpush1.bf16.msra.mxu0 0
      %832 = vmatprep.subr.bf16.mxu0 0
      %833 = vmatpush1.bf16.msra.mxu0 0
      %834 = vmatprep.mubr.bf16.mxu0 0
      %835 = vmatmul.mubr.bf16.gmra.mrb[0].mxu0 %v800
      %v836 = vpop.f32.mrb[0].mxu0
      %v837 = vadd.f32 %v784, %v836
      %v838 = vpop.f32.mrb[0].mxu0
      %v839 = vpop.f32.mrb[0].mxu0
      %v840 = vadd.f32 %v784, %v839
      %v841 = vpop.f32.mrb[0].mxu0
      %842 = vdwg.mxu0
      %v843 = vpack.c.bf16 %v840, %v837
      %845 = vrot.lane.b32.xlu0 %v843, 96
      %v846 = vpop.permute.xlu0 %845
      %vm847 = vcmask 130048
      %v849 = vsel %vm847, %v843, 0
      %v852 = vsel %vm847, %v846, 0
      %854 = vmatprep.subr.bf16.mxu0 0
      %855 = vmatpush1.bf16.xpose.msra.mxu0 %v852
      %856 = vmatprep.subr.bf16.mxu0 0
      %857 = vmatpush1.bf16.xpose.msra.mxu0 0
      %858 = vmatprep.subr.bf16.mxu0 0
      %859 = vmatpush1.bf16.xpose.msra.mxu0 0
      %860 = vmatprep.subr.bf16.mxu0 0
      %861 = vmatpush1.bf16.xpose.msra.mxu0 0
      %862 = vmatprep.subr.bf16.mxu0 0
      %863 = vmatpush1.bf16.xpose.msra.mxu0 0
      %864 = vmatprep.subr.bf16.mxu0 0
      %865 = vmatpush1.bf16.xpose.msra.mxu0 0
      %866 = vmatprep.subr.bf16.mxu0 0
      %867 = vmatpush1.bf16.xpose.msra.mxu0 0
      %868 = vmatprep.subr.bf16.mxu0 0
      %869 = vmatpush1.bf16.xpose.msra.mxu0 0
      %870 = vmatprep.subr.bf16.mxu0 0
      %871 = vmatpush1.bf16.xpose.msra.mxu0 0
      %872 = vmatprep.subr.bf16.mxu0 0
      %873 = vmatpush1.bf16.xpose.msra.mxu0 0
      %874 = vmatprep.subr.bf16.mxu0 0
      %875 = vmatpush1.bf16.xpose.msra.mxu0 0
      %876 = vmatprep.subr.bf16.mxu0 0
      %877 = vmatpush1.bf16.xpose.msra.mxu0 0
      %878 = vmatprep.subr.bf16.mxu0 0
      %879 = vmatpush1.bf16.xpose.msra.mxu0 0
      %880 = vmatprep.subr.bf16.mxu0 0
      %881 = vmatpush1.bf16.xpose.msra.mxu0 0
      %882 = vmatprep.subr.bf16.mxu0 0
      %883 = vmatpush1.bf16.xpose.msra.mxu0 0
      %884 = vmatprep.subr.bf16.mxu0 0
      %885 = vmatpush1.bf16.xpose.msra.mxu0 0
      %886 = vmatprep.mubr.bf16.mxu0 0
      %887 = vmatmul.mubr.bf16.gmra.mrb[0].mxu0 %v849
      %v888 = vpop.f32.mrb[0].mxu0
      %v889 = vadd.f32 %v772, %v888
      %v890 = vpop.f32.mrb[0].mxu0
      %v891 = vpop.f32.mrb[0].mxu0
      %v892 = vadd.f32 %v773, %v891
      %v893 = vpop.f32.mrb[0].mxu0
      %894 = vdwg.mxu0
      %v895 = vsel %vm847, %v889, -inf
      %896 = vmax.xlane.f32.xlu0 %v895
      %v897 = vpop.xlane.xlu0 %896
      %v898 = vsel %vm847, %v892, -inf
      %899 = vmax.xlane.f32.xlu0 %v898
      %v900 = vpop.xlane.xlu0 %899
      %v901 = vsub.f32 %v889, %v897
      %v902 = vsub.f32 %v892, %v900
      %v903 = vmul.f32 %v901, 1.442695
      %v904 = vpow.pop %v903
      %v905 = vmul.f32 %v902, 1.442695
      %v906 = vpow.pop %v905
      %v907 = vsel %vm847, %v904, 0.0
      %908 = vadd.xlane.f32.xlu0 %v907
      %v909 = vpop.xlane.xlu0 %908
      %v910 = vsel %vm847, %v906, 0.0
      %911 = vadd.xlane.f32.xlu0 %v910
      %v912 = vpop.xlane.xlu0 %911
      %v913 = vrcp.pop %v909
      %v914 = vrcp.pop %v912
      %v915 = vmul.f32 %v904, %v913
      %v916 = vmul.f32 %v906, %v914
      %v917 = vpack.c.bf16 %v916, %v915
      %918 = vrot.lane.b32.xlu0 %v843, 64
      %v919 = vpop.permute.xlu0 %918
      %v922 = vsel %vm847, %v917, 0
      %924 = vmatprep.subr.bf16.mxu0 0
      %925 = vmatpush1.bf16.msra.mxu0 %v919
      %926 = vmatprep.subr.bf16.mxu0 0
      %927 = vmatpush1.bf16.msra.mxu0 0
      %928 = vmatprep.subr.bf16.mxu0 0
      %929 = vmatpush1.bf16.msra.mxu0 0
      %930 = vmatprep.subr.bf16.mxu0 0
      %931 = vmatpush1.bf16.msra.mxu0 0
      %932 = vmatprep.subr.bf16.mxu0 0
      %933 = vmatpush1.bf16.msra.mxu0 0
      %934 = vmatprep.subr.bf16.mxu0 0
      %935 = vmatpush1.bf16.msra.mxu0 0
      %936 = vmatprep.subr.bf16.mxu0 0
      %937 = vmatpush1.bf16.msra.mxu0 0
      %938 = vmatprep.subr.bf16.mxu0 0
      %939 = vmatpush1.bf16.msra.mxu0 0
      %940 = vmatprep.subr.bf16.mxu0 0
      %941 = vmatpush1.bf16.msra.mxu0 0
      %942 = vmatprep.subr.bf16.mxu0 0
      %943 = vmatpush1.bf16.msra.mxu0 0
      %944 = vmatprep.subr.bf16.mxu0 0
      %945 = vmatpush1.bf16.msra.mxu0 0
      %946 = vmatprep.subr.bf16.mxu0 0
      %947 = vmatpush1.bf16.msra.mxu0 0
      %948 = vmatprep.subr.bf16.mxu0 0
      %949 = vmatpush1.bf16.msra.mxu0 0
      %950 = vmatprep.subr.bf16.mxu0 0
      %951 = vmatpush1.bf16.msra.mxu0 0
      %952 = vmatprep.subr.bf16.mxu0 0
      %953 = vmatpush1.bf16.msra.mxu0 0
      %954 = vmatprep.subr.bf16.mxu0 0
      %955 = vmatpush1.bf16.msra.mxu0 0
      %956 = vmatprep.mubr.bf16.mxu0 0
      %957 = vmatmul.mubr.bf16.gmra.mrb[0].mxu0 %v922
      %v958 = vpop.f32.mrb[0].mxu0
      %v959 = vadd.f32 0.0, %v958
      %v960 = vpop.f32.mrb[0].mxu0
      %v961 = vpop.f32.mrb[0].mxu0
      %v962 = vadd.f32 0.0, %v961
      %v963 = vpop.f32.mrb[0].mxu0
      %964 = vdwg.mxu0
      %965 = vrot.lane.b32.xlu0 %v843, 112
      %v966 = vpop.permute.xlu0 %965
      %967 = vrot.lane.b32.xlu0 %v843, 80
      %v968 = vpop.permute.xlu0 %967
      %v970 = vsel %vm847, %v966, 0
      %v973 = vsel %vm847, %v968, 0
      %975 = vmatprep.subr.bf16.mxu0 0
      %976 = vmatpush1.bf16.xpose.msra.mxu0 %v973
      %977 = vmatprep.subr.bf16.mxu0 0
      %978 = vmatpush1.bf16.xpose.msra.mxu0 0
      %979 = vmatprep.subr.bf16.mxu0 0
      %980 = vmatpush1.bf16.xpose.msra.mxu0 0
      %981 = vmatprep.subr.bf16.mxu0 0
      %982 = vmatpush1.bf16.xpose.msra.mxu0 0
      %983 = vmatprep.subr.bf16.mxu0 0
      %984 = vmatpush1.bf16.xpose.msra.mxu0 0
      %985 = vmatprep.subr.bf16.mxu0 0
      %986 = vmatpush1.bf16.xpose.msra.mxu0 0
      %987 = vmatprep.subr.bf16.mxu0 0
      %988 = vmatpush1.bf16.xpose.msra.mxu0 0
      %989 = vmatprep.subr.bf16.mxu0 0
      %990 = vmatpush1.bf16.xpose.msra.mxu0 0
      %991 = vmatprep.subr.bf16.mxu0 0
      %992 = vmatpush1.bf16.xpose.msra.mxu0 0
      %993 = vmatprep.subr.bf16.mxu0 0
      %994 = vmatpush1.bf16.xpose.msra.mxu0 0
      %995 = vmatprep.subr.bf16.mxu0 0
      %996 = vmatpush1.bf16.xpose.msra.mxu0 0
      %997 = vmatprep.subr.bf16.mxu0 0
      %998 = vmatpush1.bf16.xpose.msra.mxu0 0
      %999 = vmatprep.subr.bf16.mxu0 0
      %1000 = vmatpush1.bf16.xpose.msra.mxu0 0
      %1001 = vmatprep.subr.bf16.mxu0 0
      %1002 = vmatpush1.bf16.xpose.msra.mxu0 0
      %1003 = vmatprep.subr.bf16.mxu0 0
      %1004 = vmatpush1.bf16.xpose.msra.mxu0 0
      %1005 = vmatprep.subr.bf16.mxu0 0
      %1006 = vmatpush1.bf16.xpose.msra.mxu0 0
      %1007 = vmatprep.mubr.bf16.mxu0 0
      %1008 = vmatmul.mubr.bf16.gmra.mrb[0].mxu0 %v970
      %v1009 = vpop.f32.mrb[0].mxu0
      %v1010 = vadd.f32 %v772, %v1009
      %v1011 = vpop.f32.mrb[0].mxu0
      %v1012 = vpop.f32.mrb[0].mxu0
      %v1013 = vadd.f32 %v773, %v1012
      %v1014 = vpop.f32.mrb[0].mxu0
      %1015 = vdwg.mxu0
      %v1016 = vsel %vm847, %v1010, -inf
      %1017 = vmax.xlane.f32.xlu0 %v1016
      %v1018 = vpop.xlane.xlu0 %1017
      %v1019 = vsel %vm847, %v1013, -inf
      %1020 = vmax.xlane.f32.xlu0 %v1019
      %v1021 = vpop.xlane.xlu0 %1020
      %v1022 = vsub.f32 %v1010, %v1018
      %v1023 = vsub.f32 %v1013, %v1021
      %v1024 = vmul.f32 %v1022, 1.442695
      %v1025 = vpow.pop %v1024
      %v1026 = vmul.f32 %v1023, 1.442695
      %v1027 = vpow.pop %v1026
      %v1028 = vsel %vm847, %v1025, 0.0
      %1029 = vadd.xlane.f32.xlu0 %v1028
      %v1030 = vpop.xlane.xlu0 %1029
      %v1031 = vsel %vm847, %v1027, 0.0
      %1032 = vadd.xlane.f32.xlu0 %v1031
      %v1033 = vpop.xlane.xlu0 %1032
      %v1034 = vrcp.pop %v1030
      %v1035 = vrcp.pop %v1033
      %v1036 = vmul.f32 %v1025, %v1034
      %v1037 = vmul.f32 %v1027, %v1035
      %v1038 = vpack.c.bf16 %v1037, %v1036
      %1039 = vrot.lane.b32.xlu0 %v843, 48
      %v1040 = vpop.permute.xlu0 %1039
      %v1043 = vsel %vm847, %v1038, 0
      %1045 = vmatprep.subr.bf16.mxu0 0
      %1046 = vmatpush1.bf16.msra.mxu0 %v1040
      %1047 = vmatprep.subr.bf16.mxu0 0
      %1048 = vmatpush1.bf16.msra.mxu0 0
      %1049 = vmatprep.subr.bf16.mxu0 0
      %1050 = vmatpush1.bf16.msra.mxu0 0
      %1051 = vmatprep.subr.bf16.mxu0 0
      %1052 = vmatpush1.bf16.msra.mxu0 0
      %1053 = vmatprep.subr.bf16.mxu0 0
      %1054 = vmatpush1.bf16.msra.mxu0 0
      %1055 = vmatprep.subr.bf16.mxu0 0
      %1056 = vmatpush1.bf16.msra.mxu0 0
      %1057 = vmatprep.subr.bf16.mxu0 0
      %1058 = vmatpush1.bf16.msra.mxu0 0
      %1059 = vmatprep.subr.bf16.mxu0 0
      %1060 = vmatpush1.bf16.msra.mxu0 0
      %1061 = vmatprep.subr.bf16.mxu0 0
      %1062 = vmatpush1.bf16.msra.mxu0 0
      %1063 = vmatprep.subr.bf16.mxu0 0
      %1064 = vmatpush1.bf16.msra.mxu0 0
      %1065 = vmatprep.subr.bf16.mxu0 0
      %1066 = vmatpush1.bf16.msra.mxu0 0
      %1067 = vmatprep.subr.bf16.mxu0 0
      %1068 = vmatpush1.bf16.msra.mxu0 0
      %1069 = vmatprep.subr.bf16.mxu0 0
      %1070 = vmatpush1.bf16.msra.mxu0 0
      %1071 = vmatprep.subr.bf16.mxu0 0
      %1072 = vmatpush1.bf16.msra.mxu0 0
      %1073 = vmatprep.subr.bf16.mxu0 0
      %1074 = vmatpush1.bf16.msra.mxu0 0
      %1075 = vmatprep.subr.bf16.mxu0 0
      %1076 = vmatpush1.bf16.msra.mxu0 0
      %1077 = vmatprep.mubr.bf16.mxu0 0
      %1078 = vmatmul.mubr.bf16.gmra.mrb[0].mxu0 %v1043
      %v1079 = vpop.f32.mrb[0].mxu0
      %v1080 = vadd.f32 0.0, %v1079
      %v1081 = vpop.f32.mrb[0].mxu0
      %v1082 = vpop.f32.mrb[0].mxu0
      %v1083 = vadd.f32 0.0, %v1082
      %v1084 = vpop.f32.mrb[0].mxu0
      %1085 = vdwg.mxu0
      %1088 = vrot.lane.b32.xlu0 %v1080, 16
      %v1089 = vpop.permute.xlu0 %1088
      %1090 = vrot.lane.b32.xlu0 %v1083, 16
      %v1091 = vpop.permute.xlu0 %1090
      %v1094 = vsel %vm847, %v959, %v1089
      %v1095 = vsel %vm847, %v962, %v1091
      %v1096 = vpack.c.bf16 %v1095, %v1094
      %v1097 = vld [vmem:[%s716] sm:$0xf]
      %v1098 = vld [vmem:[%s716 + $0x4] sm:$0xf]
      %v1099 = vld [vmem:[%s716 + $0x8] sm:$0xf]
      %v1100 = vld [vmem:[%s716 + $0xc] sm:$0xf]
      %v1101 = vld [vmem:[%s719] sm:$0x1]
      %v1103 = vlaneseq
      %v1104 = vshrl.u32 %v1103, 7
      %v1105 = vsub.s32 0, %v1104
      %v1106 = vrot.slane %v1101, %v1105
      %v1112 = vunpack.c.l.b16 %v1097
      %v1113 = vunpack.c.l.b16 %v1098
      %v1114 = vunpack.c.l.b16 %v1099
      %v1115 = vunpack.c.l.b16 %v1100
      %v1116 = vpack.c.b16 %v1113, %v1112
      %v1117 = vpack.c.b16 %v1115, %v1114
      %v1121 = vsel %vm798, %v1096, 0
      %1123 = vmatprep.subr.bf16.mxu0 0
      %1124 = vmatpush1.bf16.msra.mxu0 %v1116
      %1125 = vmatprep.subr.bf16.mxu0 0
      %1126 = vmatpush1.bf16.msra.mxu0 %v1117
      %1127 = vmatprep.subr.bf16.mxu0 0
      %1128 = vmatpush1.bf16.msra.mxu0 0
      %1129 = vmatprep.subr.bf16.mxu0 0
      %1130 = vmatpush1.bf16.msra.mxu0 0
      %1131 = vmatprep.subr.bf16.mxu0 0
      %1132 = vmatpush1.bf16.msra.mxu0 0
      %1133 = vmatprep.subr.bf16.mxu0 0
      %1134 = vmatpush1.bf16.msra.mxu0 0
      %1135 = vmatprep.subr.bf16.mxu0 0
      %1136 = vmatpush1.bf16.msra.mxu0 0
      %1137 = vmatprep.subr.bf16.mxu0 0
      %1138 = vmatpush1.bf16.msra.mxu0 0
      %1139 = vmatprep.subr.bf16.mxu0 0
      %1140 = vmatpush1.bf16.msra.mxu0 0
      %1141 = vmatprep.subr.bf16.mxu0 0
      %1142 = vmatpush1.bf16.msra.mxu0 0
      %1143 = vmatprep.subr.bf16.mxu0 0
      %1144 = vmatpush1.bf16.msra.mxu0 0
      %1145 = vmatprep.subr.bf16.mxu0 0
      %1146 = vmatpush1.bf16.msra.mxu0 0
      %1147 = vmatprep.subr.bf16.mxu0 0
      %1148 = vmatpush1.bf16.msra.mxu0 0
      %1149 = vmatprep.subr.bf16.mxu0 0
      %1150 = vmatpush1.bf16.msra.mxu0 0
      %1151 = vmatprep.subr.bf16.mxu0 0
      %1152 = vmatpush1.bf16.msra.mxu0 0
      %1153 = vmatprep.subr.bf16.mxu0 0
      %1154 = vmatpush1.bf16.msra.mxu0 0
      %1155 = vmatprep.mubr.bf16.mxu0 0
      %1156 = vmatmul.mubr.bf16.gmra.mrb[0].mxu0 %v1121
      %v1157 = vpop.f32.mrb[0].mxu0
      %v1158 = vadd.f32 %v1106, %v1157
      %v1159 = vpop.f32.mrb[0].mxu0
      %v1160 = vpop.f32.mrb[0].mxu0
      %v1161 = vadd.f32 %v1106, %v1160
      %v1162 = vpop.f32.mrb[0].mxu0
      %1163 = vdwg.mxu0
      %v1164 = vadd.f32 %v763, %v1158
      %v1165 = vadd.f32 %v764, %v1161
      %v1166 = vld [vmem:[%s722] sm:$0x1]
      %v1167 = vld [vmem:[%s725] sm:$0x1]
      %v1168 = vsel %vm798, %v1164, 0.0
      %1169 = vadd.xlane.f32.xlu0 %v1168
      %v1170 = vpop.xlane.xlu0 %1169
      %v1171 = vsel %vm798, %v1165, 0.0
      %1172 = vadd.xlane.f32.xlu0 %v1171
      %v1173 = vpop.xlane.xlu0 %1172
      %v1174 = vrcp.pop 32.0
      %v1175 = vmul.f32 %v1170, %v1174
      %v1176 = vmul.f32 %v1173, %v1174
      %v1177 = vsub.f32 %v1164, %v1175
      %v1178 = vsub.f32 %v1165, %v1176
      %v1179 = vmul.f32 %v1177, %v1177
      %v1180 = vmul.f32 %v1178, %v1178
      %v1181 = vsel %vm798, %v1179, 0.0
      %1182 = vadd.xlane.f32.xlu0 %v1181
      %v1183 = vpop.xlane.xlu0 %1182
      %v1184 = vsel %vm798, %v1180, 0.0
      %1185 = vadd.xlane.f32.xlu0 %v1184
      %v1186 = vpop.xlane.xlu0 %1185
      %v1187 = vmul.f32 %v1183, %v1174
      %v1188 = vmul.f32 %v1186, %v1174
      %v1189 = vadd.f32 %v1187, 1e-05
      %v1190 = vadd.f32 %v1188, 1e-05
      %v1191 = vrsqrt.pop %v1189
      %v1192 = vrsqrt.pop %v1190
      %v1193 = vmul.f32 %v1177, %v1191
      %v1194 = vmul.f32 %v1178, %v1192
      %v1196 = vlaneseq
      %v1197 = vshrl.u32 %v1196, 7
      %v1198 = vsub.s32 0, %v1197
      %v1199 = vrot.slane %v1166, %v1198
      %v1201 = vmul.f32 %v1193, %v1199
      %v1202 = vmul.f32 %v1194, %v1199
      %v1204 = vlaneseq
      %v1205 = vshrl.u32 %v1204, 7
      %v1206 = vsub.s32 0, %v1205
      %v1207 = vrot.slane %v1167, %v1206
      %v1209 = vadd.f32 %v1201, %v1207
      %v1210 = vadd.f32 %v1202, %v1207
      %v1211 = vpack.c.bf16 %v1210, %v1209
      %v1212 = vld [vmem:[%s730] sm:$0xf]
      %v1213 = vld [vmem:[%s730 + $0x4] sm:$0xf]
      %v1214 = vld [vmem:[%s730 + $0x8] sm:$0xf]
      %v1215 = vld [vmem:[%s730 + $0xc] sm:$0xf]
      %v1216 = vld [vmem:[%s733] sm:$0x1]
      %v1218 = vlaneseq
      %v1219 = vshrl.u32 %v1218, 7
      %v1220 = vsub.s32 0, %v1219
      %v1221 = vrot.slane %v1216, %v1220
      %v1227 = vunpack.c.l.b16 %v1212
      %v1228 = vunpack.c.l.b16 %v1213
      %v1229 = vunpack.c.l.b16 %v1214
      %v1230 = vunpack.c.l.b16 %v1215
      %v1231 = vpack.c.b16 %v1228, %v1227
      %v1232 = vpack.c.b16 %v1230, %v1229
      %v1236 = vsel %vm798, %v1211, 0
      %1238 = vmatprep.subr.bf16.mxu0 0
      %1239 = vmatpush1.bf16.msra.mxu0 %v1231
      %1240 = vmatprep.subr.bf16.mxu0 0
      %1241 = vmatpush1.bf16.msra.mxu0 %v1232
      %1242 = vmatprep.subr.bf16.mxu0 0
      %1243 = vmatpush1.bf16.msra.mxu0 0
      %1244 = vmatprep.subr.bf16.mxu0 0
      %1245 = vmatpush1.bf16.msra.mxu0 0
      %1246 = vmatprep.subr.bf16.mxu0 0
      %1247 = vmatpush1.bf16.msra.mxu0 0
      %1248 = vmatprep.subr.bf16.mxu0 0
      %1249 = vmatpush1.bf16.msra.mxu0 0
      %1250 = vmatprep.subr.bf16.mxu0 0
      %1251 = vmatpush1.bf16.msra.mxu0 0
      %1252 = vmatprep.subr.bf16.mxu0 0
      %1253 = vmatpush1.bf16.msra.mxu0 0
      %1254 = vmatprep.subr.bf16.mxu0 0
      %1255 = vmatpush1.bf16.msra.mxu0 0
      %1256 = vmatprep.subr.bf16.mxu0 0
      %1257 = vmatpush1.bf16.msra.mxu0 0
      %1258 = vmatprep.subr.bf16.mxu0 0
      %1259 = vmatpush1.bf16.msra.mxu0 0
      %1260 = vmatprep.subr.bf16.mxu0 0
      %1261 = vmatpush1.bf16.msra.mxu0 0
      %1262 = vmatprep.subr.bf16.mxu0 0
      %1263 = vmatpush1.bf16.msra.mxu0 0
      %1264 = vmatprep.subr.bf16.mxu0 0
      %1265 = vmatpush1.bf16.msra.mxu0 0
      %1266 = vmatprep.subr.bf16.mxu0 0
      %1267 = vmatpush1.bf16.msra.mxu0 0
      %1268 = vmatprep.subr.bf16.mxu0 0
      %1269 = vmatpush1.bf16.msra.mxu0 0
      %1270 = vmatprep.mubr.bf16.mxu0 0
      %1271 = vmatmul.mubr.bf16.gmra.mrb[0].mxu0 %v1236
      %v1272 = vpop.f32.mrb[0].mxu0
      %v1273 = vadd.f32 %v1221, %v1272
      %v1274 = vpop.f32.mrb[0].mxu0
      %v1275 = vpop.f32.mrb[0].mxu0
      %v1276 = vadd.f32 %v1221, %v1275
      %v1277 = vpop.f32.mrb[0].mxu0
      %1278 = vdwg.mxu0
      %v1279 = vmax.f32 %v1273, 0.0
      %v1280 = vmax.f32 %v1276, 0.0
      %v1281 = vpack.c.bf16 %v1280, %v1279
      %v1282 = vld [vmem:[%s738] sm:$0xf]
      %v1283 = vld [vmem:[%s738 + $0x4] sm:$0xf]
      %v1284 = vld [vmem:[%s738 + $0x8] sm:$0xf]
      %v1285 = vld [vmem:[%s738 + $0xc] sm:$0xf]
      %v1286 = vld [vmem:[%s738 + $0x10] sm:$0xf]
      %v1287 = vld [vmem:[%s738 + $0x14] sm:$0xf]
      %v1288 = vld [vmem:[%s738 + $0x18] sm:$0xf]
      %v1289 = vld [vmem:[%s738 + $0x1c] sm:$0xf]
      %v1290 = vld [vmem:[%s738 + $0x20] sm:$0xf]
      %v1291 = vld [vmem:[%s738 + $0x24] sm:$0xf]
      %v1292 = vld [vmem:[%s738 + $0x28] sm:$0xf]
      %v1293 = vld [vmem:[%s738 + $0x2c] sm:$0xf]
      %v1294 = vld [vmem:[%s738 + $0x30] sm:$0xf]
      %v1295 = vld [vmem:[%s738 + $0x34] sm:$0xf]
      %v1296 = vld [vmem:[%s738 + $0x38] sm:$0xf]
      %v1297 = vld [vmem:[%s738 + $0x3c] sm:$0xf]
      %v1298 = vld [vmem:[%s741] sm:$0x1]
      %v1300 = vlaneseq
      %v1301 = vshrl.u32 %v1300, 7
      %v1302 = vsub.s32 0, %v1301
      %v1303 = vrot.slane %v1298, %v1302
      %v1321 = vunpack.c.l.b16 %v1282
      %v1322 = vunpack.c.l.b16 %v1283
      %v1323 = vunpack.c.l.b16 %v1284
      %v1324 = vunpack.c.l.b16 %v1285
      %v1325 = vunpack.c.l.b16 %v1286
      %v1326 = vunpack.c.l.b16 %v1287
      %v1327 = vunpack.c.l.b16 %v1288
      %v1328 = vunpack.c.l.b16 %v1289
      %v1329 = vunpack.c.l.b16 %v1290
      %v1330 = vunpack.c.l.b16 %v1291
      %v1331 = vunpack.c.l.b16 %v1292
      %v1332 = vunpack.c.l.b16 %v1293
      %v1333 = vunpack.c.l.b16 %v1294
      %v1334 = vunpack.c.l.b16 %v1295
      %v1335 = vunpack.c.l.b16 %v1296
      %v1336 = vunpack.c.l.b16 %v1297
      %v1337 = vpack.c.b16 %v1322, %v1321
      %v1338 = vpack.c.b16 %v1324, %v1323
      %v1339 = vpack.c.b16 %v1326, %v1325
      %v1340 = vpack.c.b16 %v1328, %v1327
      %v1341 = vpack.c.b16 %v1330, %v1329
      %v1342 = vpack.c.b16 %v1332, %v1331
      %v1343 = vpack.c.b16 %v1334, %v1333
      %v1344 = vpack.c.b16 %v1336, %v1335
      %1353 = vmatprep.subr.bf16.mxu0 0
      %1354 = vmatpush1.bf16.msra.mxu0 %v1337
      %1355 = vmatprep.subr.bf16.mxu0 0
      %1356 = vmatpush1.bf16.msra.mxu0 %v1338
      %1357 = vmatprep.subr.bf16.mxu0 0
      %1358 = vmatpush1.bf16.msra.mxu0 %v1339
      %1359 = vmatprep.subr.bf16.mxu0 0
      %1360 = vmatpush1.bf16.msra.mxu0 %v1340
      %1361 = vmatprep.subr.bf16.mxu0 0
      %1362 = vmatpush1.bf16.msra.mxu0 %v1341
      %1363 = vmatprep.subr.bf16.mxu0 0
      %1364 = vmatpush1.bf16.msra.mxu0 %v1342
      %1365 = vmatprep.subr.bf16.mxu0 0
      %1366 = vmatpush1.bf16.msra.mxu0 %v1343
      %1367 = vmatprep.subr.bf16.mxu0 0
      %1368 = vmatpush1.bf16.msra.mxu0 %v1344
      %1369 = vmatprep.subr.bf16.mxu0 0
      %1370 = vmatpush1.bf16.msra.mxu0 0
      %1371 = vmatprep.subr.bf16.mxu0 0
      %1372 = vmatpush1.bf16.msra.mxu0 0
      %1373 = vmatprep.subr.bf16.mxu0 0
      %1374 = vmatpush1.bf16.msra.mxu0 0
      %1375 = vmatprep.subr.bf16.mxu0 0
      %1376 = vmatpush1.bf16.msra.mxu0 0
      %1377 = vmatprep.subr.bf16.mxu0 0
      %1378 = vmatpush1.bf16.msra.mxu0 0
      %1379 = vmatprep.subr.bf16.mxu0 0
      %1380 = vmatpush1.bf16.msra.mxu0 0
      %1381 = vmatprep.subr.bf16.mxu0 0
      %1382 = vmatpush1.bf16.msra.mxu0 0
      %1383 = vmatprep.subr.bf16.mxu0 0
      %1384 = vmatpush1.bf16.msra.mxu0 0
      %1385 = vmatprep.mubr.bf16.mxu0 0
      %1386 = vmatmul.mubr.bf16.gmra.mrb[0].mxu0 %v1281
      %v1387 = vpop.f32.mrb[0].mxu0
      %v1388 = vadd.f32 %v1303, %v1387
      %v1389 = vpop.f32.mrb[0].mxu0
      %v1390 = vpop.f32.mrb[0].mxu0
      %v1391 = vadd.f32 %v1303, %v1390
      %v1392 = vpop.f32.mrb[0].mxu0
      %1393 = vdwg.mxu0
      %v1394 = vadd.f32 %v1209, %v1388
      %v1395 = vadd.f32 %v1210, %v1391
      %v1396 = vld [vmem:[%s744] sm:$0x1]
      %v1397 = vld [vmem:[%s747] sm:$0x1]
      %v1398 = vsel %vm798, %v1394, 0.0
      %1399 = vadd.xlane.f32.xlu0 %v1398
      %v1400 = vpop.xlane.xlu0 %1399
      %v1401 = vsel %vm798, %v1395, 0.0
      %1402 = vadd.xlane.f32.xlu0 %v1401
      %v1403 = vpop.xlane.xlu0 %1402
      %v1404 = vmul.f32 %v1400, %v1174
      %v1405 = vmul.f32 %v1403, %v1174
      %v1406 = vsub.f32 %v1394, %v1404
      %v1407 = vsub.f32 %v1395, %v1405
      %v1408 = vmul.f32 %v1406, %v1406
      %v1409 = vmul.f32 %v1407, %v1407
      %v1410 = vsel %vm798, %v1408, 0.0
      %1411 = vadd.xlane.f32.xlu0 %v1410
      %v1412 = vpop.xlane.xlu0 %1411
      %v1413 = vsel %vm798, %v1409, 0.0
      %1414 = vadd.xlane.f32.xlu0 %v1413
      %v1415 = vpop.xlane.xlu0 %1414
      %v1416 = vmul.f32 %v1412, %v1174
      %v1417 = vmul.f32 %v1415, %v1174
      %v1418 = vadd.f32 %v1416, 1e-05
      %v1419 = vadd.f32 %v1417, 1e-05
      %v1420 = vrsqrt.pop %v1418
      %v1421 = vrsqrt.pop %v1419
      %v1422 = vmul.f32 %v1406, %v1420
      %v1423 = vmul.f32 %v1407, %v1421
      %v1425 = vlaneseq
      %v1426 = vshrl.u32 %v1425, 7
      %v1427 = vsub.s32 0, %v1426
      %v1428 = vrot.slane %v1396, %v1427
      %v1430 = vmul.f32 %v1422, %v1428
      %v1431 = vmul.f32 %v1423, %v1428
      %v1433 = vlaneseq
      %v1434 = vshrl.u32 %v1433, 7
      %v1435 = vsub.s32 0, %v1434
      %v1436 = vrot.slane %v1397, %v1435
      %v1438 = vadd.f32 %v1430, %v1436
      %v1439 = vadd.f32 %v1431, %v1436
      %1440 = vst.msk [vmem:[#allocation2] sm:$0xff] %vm798, %v1438
      %1441 = vst.msk [vmem:[#allocation2 + $0x8] sm:$0xff] %vm798, %v1439
      %p1442 = scmp.eq.s32.totalorder %s33, 1
      // Predicated region
      $region93: #{image_generator_forward.1} parent=87 // pred_check
        %p1443 = pneg %p1442
      $region94: #{image_generator_forward.1} parent=87 // pred_check_branch
        %1445 = sbr.rel (%p1443) target = $region96
      $region95: #{image_generator_forward.1} parent=87 // pred_region
        %v1446 = vld [vmem:[%s13] sm:$0x1]
        %v1447 = vld [vmem:[%s14] sm:$0x1]
        %v1448 = vsel %vm798, %v1438, 0.0
        %1449 = vadd.xlane.f32.xlu0 %v1448
        %v1450 = vpop.xlane.xlu0 %1449
        %v1451 = vsel %vm798, %v1439, 0.0
        %1452 = vadd.xlane.f32.xlu0 %v1451
        %v1453 = vpop.xlane.xlu0 %1452
        %v1454 = vmul.f32 %v1450, %v1174
        %v1455 = vmul.f32 %v1453, %v1174
        %v1456 = vsub.f32 %v1438, %v1454
        %v1457 = vsub.f32 %v1439, %v1455
        %v1458 = vmul.f32 %v1456, %v1456
        %v1459 = vmul.f32 %v1457, %v1457
        %v1460 = vsel %vm798, %v1458, 0.0
        %1461 = vadd.xlane.f32.xlu0 %v1460
        %v1462 = vpop.xlane.xlu0 %1461
        %v1463 = vsel %vm798, %v1459, 0.0
        %1464 = vadd.xlane.f32.xlu0 %v1463
        %v1465 = vpop.xlane.xlu0 %1464
        %v1466 = vmul.f32 %v1462, %v1174
        %v1467 = vmul.f32 %v1465, %v1174
        %v1468 = vadd.f32 %v1466, 1e-05
        %v1469 = vadd.f32 %v1467, 1e-05
        %v1470 = vrsqrt.pop %v1468
        %v1471 = vrsqrt.pop %v1469
        %v1472 = vmul.f32 %v1456, %v1470
        %v1473 = vmul.f32 %v1457, %v1471
        %v1475 = vlaneseq
        %v1476 = vshrl.u32 %v1475, 7
        %v1477 = vsub.s32 0, %v1476
        %v1478 = vrot.slane %v1446, %v1477
        %v1480 = vmul.f32 %v1472, %v1478
        %v1481 = vmul.f32 %v1473, %v1478
        %v1483 = vlaneseq
        %v1484 = vshrl.u32 %v1483, 7
        %v1485 = vsub.s32 0, %v1484
        %v1486 = vrot.slane %v1447, %v1485
        %v1488 = vadd.f32 %v1480, %v1486
        %v1489 = vadd.f32 %v1481, %v1486
        %v1490 = vpack.c.bf16 %v1489, %v1488
        %v1491 = vld [vmem:[%s15] sm:$0xf]
        %v1492 = vld [vmem:[%s15 + $0x4] sm:$0xf]
        %v1493 = vld [vmem:[%s15 + $0x8] sm:$0xf]
        %v1494 = vld [vmem:[%s15 + $0xc] sm:$0xf]
        %v1495 = vld [vmem:[%s16] sm:$0x1]
        %v1497 = vlaneseq
        %v1498 = vshrl.u32 %v1497, 7
        %v1499 = vsub.s32 0, %v1498
        %v1500 = vrot.slane %v1495, %v1499
        %v1506 = vunpack.c.l.b16 %v1491
        %v1507 = vunpack.c.l.b16 %v1492
        %v1508 = vunpack.c.l.b16 %v1493
        %v1509 = vunpack.c.l.b16 %v1494
        %v1510 = vpack.c.b16 %v1507, %v1506
        %v1511 = vpack.c.b16 %v1509, %v1508
        %v1515 = vsel %vm798, %v1490, 0
        %1517 = vmatprep.subr.bf16.mxu0 0
        %1518 = vmatpush1.bf16.msra.mxu0 %v1510
        %1519 = vmatprep.subr.bf16.mxu0 0
        %1520 = vmatpush1.bf16.msra.mxu0 %v1511
        %1521 = vmatprep.subr.bf16.mxu0 0
        %1522 = vmatpush1.bf16.msra.mxu0 0
        %1523 = vmatprep.subr.bf16.mxu0 0
        %1524 = vmatpush1.bf16.msra.mxu0 0
        %1525 = vmatprep.subr.bf16.mxu0 0
        %1526 = vmatpush1.bf16.msra.mxu0 0
        %1527 = vmatprep.subr.bf16.mxu0 0
        %1528 = vmatpush1.bf16.msra.mxu0 0
        %1529 = vmatprep.subr.bf16.mxu0 0
        %1530 = vmatpush1.bf16.msra.mxu0 0
        %1531 = vmatprep.subr.bf16.mxu0 0
        %1532 = vmatpush1.bf16.msra.mxu0 0
        %1533 = vmatprep.subr.bf16.mxu0 0
        %1534 = vmatpush1.bf16.msra.mxu0 0
        %1535 = vmatprep.subr.bf16.mxu0 0
        %1536 = vmatpush1.bf16.msra.mxu0 0
        %1537 = vmatprep.subr.bf16.mxu0 0
        %1538 = vmatpush1.bf16.msra.mxu0 0
        %1539 = vmatprep.subr.bf16.mxu0 0
        %1540 = vmatpush1.bf16.msra.mxu0 0
        %1541 = vmatprep.subr.bf16.mxu0 0
        %1542 = vmatpush1.bf16.msra.mxu0 0
        %1543 = vmatprep.subr.bf16.mxu0 0
        %1544 = vmatpush1.bf16.msra.mxu0 0
        %1545 = vmatprep.subr.bf16.mxu0 0
        %1546 = vmatpush1.bf16.msra.mxu0 0
        %1547 = vmatprep.subr.bf16.mxu0 0
        %1548 = vmatpush1.bf16.msra.mxu0 0
        %1549 = vmatprep.mubr.bf16.mxu0 0
        %1550 = vmatmul.mubr.bf16.gmra.mrb[0].mxu0 %v1515
        %v1551 = vpop.f32.mrb[0].mxu0
        %v1552 = vadd.f32 %v1500, %v1551
        %v1553 = vpop.f32.mrb[0].mxu0
        %v1554 = vpop.f32.mrb[0].mxu0
        %v1555 = vadd.f32 %v1500, %v1554
        %v1556 = vpop.f32.mrb[0].mxu0
        %1557 = vdwg.mxu0
        %1558 = vst [vmem:[%s752] sm:$0xff] %v1552
        %1559 = vst [vmem:[%s752 + $0x8] sm:$0xff] %v1555
      $region96: #{image_generator_forward.1} parent=87 // pred_fallthru
        _
      %p1560 = scmp.lt.s32.totalorder %s32, 1
      %s1561 = scalar_select %p1560, %s32, 1
      %s1562 = smul.addr %s1561, 2
      %s1563 = smul.addr %s1562, 8
      %s1564 = scalar_lea.vmem %s17, %s1563
      // Predicated region
      $region97: #{image_generator_forward.1} parent=87 // pred_check
        %p1565 = pneg %p480
      $region98: #{image_generator_forward.1} parent=87 // pred_check_branch
        %1567 = sbr.rel (%p1565) target = $region100
      $region99: #{image_generator_forward.1} parent=87 // pred_region
        _
      $region100: #{image_generator_forward.1} parent=87 // pred_fallthru
        _
    $region88: #{image_generator_forward.1} parent=5 // pred_fallthru
      _
    %p1568 = scmp.le.s32.totalorder 2, %s23
    // Predicated region
    $region101: #{image_generator_forward.1} parent=5 // pred_check
      %p1569 = pneg %p1568
    $region102: #{image_generator_forward.1} parent=5 // pred_check_branch
      %1571 = sbr.rel (%p1569) target = $region104
    $region103: #{image_generator_forward.1} parent=5 // pred_region
      %s1572 = ssub.s32 %s23, 2
      // Predicated region
      $region105: #{image_generator_forward.1} parent=103 // pred_check
        %p1573 = pneg %p486
      $region106: #{image_generator_forward.1} parent=103 // pred_check_branch
        %1575 = sbr.rel (%p1573) target = $region108
      $region107: #{image_generator_forward.1} parent=103 // pred_region
        %p1576 = scmp.lt.s32.totalorder %s34, 1
        %s1577 = scalar_select %p1576, %s34, 1
        %s1578 = smul.addr %s1577, 2
        %s1579 = smul.addr %s1578, 8
        %s1580 = scalar_lea.vmem %s17, %s1579
      $region108: #{image_generator_forward.1} parent=103 // pred_fallthru
        _
    $region104: #{image_generator_forward.1} parent=5 // pred_fallthru
      _
  $region6: #{image_generator_forward.1} parent=0 // loop_footer
    %s27 = sadd.s32 1, %s23
  $region7: #{image_generator_forward.1} parent=0 // loop_footer_branch
    %22 = sbr.rel target = $region3
  $region8: #{image_generator_forward.1} parent=0 // loop_exit
    _

</llo_original>
